<compile_context>
chip_gen: v5e
topology: v5e:2x2
jax: 0.10.0
libtpu: 0.0.40
codegen_flags: <defaults>
</compile_context>

<pallas_src>
import functools

import jax
import jax.numpy as jnp
from jax import lax
from jax.experimental import pallas as pl
from jax.experimental.pallas import tpu as pltpu


def _double_conv_pool_kernel(
    x_ref,            # (hp*wp, 4*Cin) bf16 : 2x2 pooling-window taps packed along lanes
    w1_ref,           # (3, 3*Cin,  Cout) bf16 : conv1 im2col weights, split by ky
    w2_ref,           # (3, 3*Cout, Cout) bf16 : conv2 im2col weights, split by ky
    s1_ref, t1_ref,   # (1, Cout) f32 : folded conv-bias + eval-BN scale / shift (conv1)
    s2_ref, t2_ref,   # (1, Cout) f32 : folded conv-bias + eval-BN scale / shift (conv2)
    out_ref,          # (hp*wp, Cout) bf16
    pad1_ref,         # scratch (Gv + hp*wp + Gv, Cin)  f32, Gv = wp+1 vertical guards
    pad2_ref,         # scratch (Gv + hp*wp + Gv, Cout) f32
    *, hp, wp, cin, cout,
):
  Lr = hp * wp          # one row per output pixel (flat y*wp + x order)
  Gv = wp + 1           # vertical zero-guard rows (covers max |tap row offset|)

  # Zero ONLY the guard rows (2*Gv rows), every step.  The interior [Gv:Gv+Lr] is fully
  # overwritten each step, and a once-only init keyed on program_id==0 would break when
  # the parallel batch axis is sharded across TensorCores (per-core scratch).
  pad1_ref[0:Gv, :] = jnp.zeros((Gv, cin), jnp.float32)
  pad1_ref[Gv + Lr:Gv + Lr + Gv, :] = jnp.zeros((Gv, cin), jnp.float32)
  pad2_ref[0:Gv, :] = jnp.zeros((Gv, cout), jnp.float32)
  pad2_ref[Gv + Lr:Gv + Lr + Gv, :] = jnp.zeros((Gv, cout), jnp.float32)

  # ---- MaxPool2d(2): reduce the 4 lane-packed window taps (3 VPU max ops, exact).
  x = x_ref[...]
  pooled = jnp.maximum(
      jnp.maximum(x[:, 0 * cin:1 * cin], x[:, 1 * cin:2 * cin]),
      jnp.maximum(x[:, 2 * cin:3 * cin], x[:, 3 * cin:4 * cin]))      # (Lr, Cin) bf16

  # single slab store into the guarded buffer
  pad1_ref[Gv:Gv + Lr, :] = pooled.astype(jnp.float32)

  # Left/right edge masks generated in-kernel (no lane-padded (Lr, 2) HBM input):
  # taps whose dx=+/-1 offset wraps across the row boundary in flat index space get zeroed.
  col = lax.broadcasted_iota(jnp.int32, (Lr, 1), 0) % wp
  not_left = col != 0          # kills dx=-1 taps at x == 0
  not_right = col != wp - 1    # kills dx=+1 taps at x == wp-1

  def conv_bn_relu(src_ref, w_ref, s_ref, t_ref, c):
    # Split-K im2col: for each ky, pack the 3 dx taps along lanes -> (Lr, 3*c) bf16,
    # matmul against (3*c, Cout) bf16 on the MXU with f32 accumulation, and sum the
    # three partials.  3x smaller patch temp than a single (Lr, 9*c) slab.
    # Hoist the mask broadcasts (JAX does not CSE broadcast_in_dim inside the loop).
    m_left = jnp.broadcast_to(not_left, (Lr, c))
    m_right = jnp.broadcast_to(not_right, (Lr, c))
    tap_mask = (m_left, None, m_right)      # indexed by kx (left, mid, right)

    acc = None
    for ky in range(3):
      pieces = []
      for kx in range(3):
        off = (ky - 1) * wp + (kx - 1)      # 3x3 tap offset in flat (y*wp + x) space
        patch = src_ref[Gv + off:Gv + off + Lr, :]        # (Lr, c) f32 slice load
        if tap_mask[kx] is not None:
          patch = jnp.where(tap_mask[kx], patch, 0.0)     # f32 mask application
        pieces.append(patch.astype(jnp.bfloat16))
      row_patch = jnp.concatenate(pieces, axis=1)          # (Lr, 3*c) bf16
      part = jnp.dot(row_patch, w_ref[ky],                 # (3*c, Cout) bf16 weights
                     preferred_element_type=jnp.float32)   # MXU, f32 acc
      acc = part if acc is None else acc + part
    # folded conv-bias + eval-BN + ReLU epilogue in f32 (VPU; v5e has no bf16 VPU)
    return jnp.maximum(acc * s_ref[...] + t_ref[...], 0.0)

  h1 = conv_bn_relu(pad1_ref, w1_ref, s1_ref, t1_ref, cin)       # (Lr, Cout) f32
  pad2_ref[Gv:Gv + Lr, :] = h1

  out_ref[...] = conv_bn_relu(pad2_ref, w2_ref, s2_ref, t2_ref,
                              cout).astype(out_ref.dtype)         # bf16 writeback


def _vmem_limit_bytes():
  # Per-generation VMEM budget: ~75% of physical (128 MiB v5e/v6e -> 96 MiB,
  # 64 MiB v7x -> 48 MiB), leaving headroom for compiler-internal scratch.
  try:
    phys = pltpu.get_tpu_info().vmem_capacity_bytes
  except Exception:
    phys = 64 * 1024 * 1024
  return int(min(phys * 3 // 4, 96 * 1024 * 1024))


def double_conv_pool_nhwc(x_nhwc, params):
  """Fused MaxPool2d(2) -> (Conv3x3 -> BN(eval) -> ReLU) x2, NHWC in / NHWC out.

  NHWC-first so chained UNet blocks avoid the NCHW<->NHWC HBM round trips; the bf16
  cast is fused into the single 2x2 tap-packing op.
  """
  (w1, b1, g1, be1, m1, v1, w2, b2, g2, be2, m2, v2) = params
  N, H, W, Cin = x_nhwc.shape
  Cout = w1.shape[0]
  hp, wp = H // 2, W // 2
  Lr = hp * wp
  Gv = wp + 1
  eps = 1e-5

  # fold conv bias + eval-mode BatchNorm into one per-channel scale/shift
  s1 = (g1 / jnp.sqrt(v1 + eps)).astype(jnp.float32)
  t1 = ((b1 - m1) * s1 + be1).astype(jnp.float32)
  s2 = (g2 / jnp.sqrt(v2 + eps)).astype(jnp.float32)
  t2 = ((b2 - m2) * s2 + be2).astype(jnp.float32)

  # Pack each 2x2 pooling window's 4 taps along the lane dim; bf16 cast fused here so
  # the activations take exactly one wrapper HBM pass before the kernel.
  x6 = x_nhwc.reshape(N, hp, 2, wp, 2, Cin)
  xp = jnp.transpose(x6, (0, 1, 3, 2, 4, 5)).reshape(N, Lr, 4 * Cin).astype(jnp.bfloat16)

  # (Cout, Cin, 3, 3) OIHW -> (ky, kx, c, o) -> (3, 3*C, Cout) bf16 im2col weights,
  # split along ky to match the in-kernel split-K accumulation.
  w1k = jnp.transpose(w1, (2, 3, 1, 0)).reshape(3, 3 * Cin, Cout).astype(jnp.bfloat16)
  w2k = jnp.transpose(w2, (2, 3, 1, 0)).reshape(3, 3 * Cout, Cout).astype(jnp.bfloat16)

  kern = functools.partial(_double_conv_pool_kernel, hp=hp, wp=wp, cin=Cin, cout=Cout)

  grid_spec = pltpu.PrefetchScalarGridSpec(
      num_scalar_prefetch=0,
      grid=(N,),
      in_specs=[
          pl.BlockSpec((None, Lr, 4 * Cin), lambda n: (n, 0, 0)),   # per-image activations
          # grid-invariant operands: constant block index -> DMA'd once by the pipeline.
          # TODO(synk): single-buffer these (pipeline_mode=pl.Buffered(1)) together with
          #             the v7x row-block axis to reclaim VMEM at real channel counts.
          pl.BlockSpec((3, 3 * Cin, Cout), lambda n: (0, 0, 0)),
          pl.BlockSpec((3, 3 * Cout, Cout), lambda n: (0, 0, 0)),
          pl.BlockSpec((1, Cout), lambda n: (0, 0)),
          pl.BlockSpec((1, Cout), lambda n: (0, 0)),
          pl.BlockSpec((1, Cout), lambda n: (0, 0)),
          pl.BlockSpec((1, Cout), lambda n: (0, 0)),
      ],
      out_specs=pl.BlockSpec((None, Lr, Cout), lambda n: (n, 0, 0)),
      scratch_shapes=[
          pltpu.VMEM((Gv + Lr + Gv, Cin), jnp.float32),
          pltpu.VMEM((Gv + Lr + Gv, Cout), jnp.float32),
      ],
  )

  out_flat = pl.pallas_call(
      kern,
      out_shape=jax.ShapeDtypeStruct((N, Lr, Cout), jnp.bfloat16),   # bf16 HBM writeback
      grid_spec=grid_spec,
      compiler_params=pltpu.CompilerParams(
          dimension_semantics=("parallel",),          # megacore / 2-TC sharding on v7x
          vmem_limit_bytes=_vmem_limit_bytes()),
  )(xp, w1k, w2k,
    s1.reshape(1, Cout), t1.reshape(1, Cout),
    s2.reshape(1, Cout), t2.reshape(1, Cout))

  return out_flat.reshape(N, hp, wp, Cout)            # metadata-only reshape


def double_conv_pool(x_nchw, params):
  # NCHW adapter for parity with the PyTorch module; real pipelines should chain
  # double_conv_pool_nhwc directly and skip both transposes.
  x_nhwc = jnp.transpose(x_nchw, (0, 2, 3, 1))
  out_nhwc = double_conv_pool_nhwc(x_nhwc, params)
  return jnp.transpose(out_nhwc, (0, 3, 1, 2))


def _reference(x, params):
  (w1, b1, g1, be1, m1, v1, w2, b2, g2, be2, m2, v2) = params
  eps = 1e-5
  p = lax.reduce_window(x, -jnp.inf, lax.max, (1, 1, 2, 2), (1, 1, 2, 2), 'VALID')

  def conv_bn_relu(h, w, b, g, be, mu, var):
    y = lax.conv_general_dilated(h, w, (1, 1), ((1, 1), (1, 1)),
                                 dimension_numbers=('NCHW', 'OIHW', 'NCHW'),
                                 precision=lax.Precision.HIGHEST)
    y = y + b[None, :, None, None]
    y = (y - mu[None, :, None, None]) / jnp.sqrt(var + eps)[None, :, None, None]
    y = y * g[None, :, None, None] + be[None, :, None, None]
    return jnp.maximum(y, 0.0)

  h = conv_bn_relu(p, w1, b1, g1, be1, m1, v1)
  h = conv_bn_relu(h, w2, b2, g2, be2, m2, v2)
  return h


if __name__ == "__main__":
  N, Cin, H, W = 2, 4, 16, 16
  Cout = 8  # out_channels; bn=True, drop_rate=0

  key = jax.random.PRNGKey(0)
  ks = jax.random.split(key, 13)
  x = jax.random.normal(ks[0], (N, Cin, H, W), jnp.float32)

  w1 = jax.random.normal(ks[1], (Cout, Cin, 3, 3), jnp.float32) * 0.1
  b1 = jax.random.normal(ks[2], (Cout,), jnp.float32) * 0.1
  g1 = 0.5 + jax.random.uniform(ks[3], (Cout,), jnp.float32)
  be1 = jax.random.normal(ks[4], (Cout,), jnp.float32) * 0.1
  m1 = jax.random.normal(ks[5], (Cout,), jnp.float32) * 0.1
  v1 = 0.5 + jax.random.uniform(ks[6], (Cout,), jnp.float32)

  w2 = jax.random.normal(ks[7], (Cout, Cout, 3, 3), jnp.float32) * 0.1
  b2 = jax.random.normal(ks[8], (Cout,), jnp.float32) * 0.1
  g2 = 0.5 + jax.random.uniform(ks[9], (Cout,), jnp.float32)
  be2 = jax.random.normal(ks[10], (Cout,), jnp.float32) * 0.1
  m2 = jax.random.normal(ks[11], (Cout,), jnp.float32) * 0.1
  v2 = 0.5 + jax.random.uniform(ks[12], (Cout,), jnp.float32)

  params = (w1, b1, g1, be1, m1, v1, w2, b2, g2, be2, m2, v2)

  out = double_conv_pool(x, params)
  out = jax.block_until_ready(out)

  ref = _reference(x, params)
  assert out.shape == (N, Cout, H // 2, W // 2), out.shape
  # bf16 MXU operands / bf16 output with f32 accumulation -> bf16-level tolerance
  out_f32 = out.astype(jnp.float32)
  assert jnp.allclose(out_f32, ref, rtol=2e-2, atol=4e-2), float(
      jnp.max(jnp.abs(out_f32 - ref)))

  print("KERNEL_OK")
</pallas_src>

<mosaic_0001>
module attributes {stable_mosaic.version = 11 : i64} {
  func.func @_double_conv_pool_kernel(%arg0: i32, %arg1: memref<1x64x16xbf16, #tpu.memory_space<vmem>>, %arg2: memref<3x12x8xbf16, #tpu.memory_space<vmem>>, %arg3: memref<3x24x8xbf16, #tpu.memory_space<vmem>>, %arg4: memref<1x8xf32, #tpu.memory_space<vmem>>, %arg5: memref<1x8xf32, #tpu.memory_space<vmem>>, %arg6: memref<1x8xf32, #tpu.memory_space<vmem>>, %arg7: memref<1x8xf32, #tpu.memory_space<vmem>>, %arg8: memref<1x64x8xbf16, #tpu.memory_space<vmem>>, %arg9: memref<82x4xf32, #tpu.memory_space<vmem>>, %arg10: memref<82x8xf32, #tpu.memory_space<vmem>>) attributes {dimension_semantics = [#tpu.dimension_semantics<parallel>], iteration_bounds = array<i64: 2>, scalar_prefetch = 0 : i64, scratch_operands = 2 : i64, tpu.core_type = #tpu.core_type<tc>, window_params = [{transform_indices = @transform_0, window_bounds = array<i64: 1, 64, 16>}, {pipeline_mode = #tpu.pipeline_mode<synchronous>, transform_indices = @transform_1, window_bounds = array<i64: 3, 12, 8>}, {pipeline_mode = #tpu.pipeline_mode<synchronous>, transform_indices = @transform_2, window_bounds = array<i64: 3, 24, 8>}, {pipeline_mode = #tpu.pipeline_mode<synchronous>, transform_indices = @transform_3, window_bounds = array<i64: 1, 8>}, {pipeline_mode = #tpu.pipeline_mode<synchronous>, transform_indices = @transform_4, window_bounds = array<i64: 1, 8>}, {pipeline_mode = #tpu.pipeline_mode<synchronous>, transform_indices = @transform_5, window_bounds = array<i64: 1, 8>}, {pipeline_mode = #tpu.pipeline_mode<synchronous>, transform_indices = @transform_6, window_bounds = array<i64: 1, 8>}, {transform_indices = @transform_7, window_bounds = array<i64: 1, 64, 8>}]} {
    %cst = arith.constant 0.000000e+00 : f32
    %0 = vector.broadcast %cst : f32 to vector<9x4xf32>
    %c0 = arith.constant 0 : index
    %c0_0 = arith.constant 0 : index
    %1 = vector.load %arg9[%c0, %c0_0] : memref<82x4xf32, #tpu.memory_space<vmem>>, vector<9x4xf32>
    tpu.vector_store %arg9[%c0, %c0_0], %0 {strides = array<i32>} : memref<82x4xf32, #tpu.memory_space<vmem>>, vector<9x4xf32>,
    %cst_1 = arith.constant 0.000000e+00 : f32
    %2 = vector.broadcast %cst_1 : f32 to vector<9x4xf32>
    %c73 = arith.constant 73 : index
    %c0_2 = arith.constant 0 : index
    %3 = vector.load %arg9[%c73, %c0_2] : memref<82x4xf32, #tpu.memory_space<vmem>>, vector<9x4xf32>
    tpu.vector_store %arg9[%c73, %c0_2], %2 {strides = array<i32>} : memref<82x4xf32, #tpu.memory_space<vmem>>, vector<9x4xf32>,
    %cst_3 = arith.constant 0.000000e+00 : f32
    %4 = vector.broadcast %cst_3 : f32 to vector<9x8xf32>
    %c0_4 = arith.constant 0 : index
    %c0_5 = arith.constant 0 : index
    %5 = vector.load %arg10[%c0_4, %c0_5] : memref<82x8xf32, #tpu.memory_space<vmem>>, vector<9x8xf32>
    tpu.vector_store %arg10[%c0_4, %c0_5], %4 {strides = array<i32>} : memref<82x8xf32, #tpu.memory_space<vmem>>, vector<9x8xf32>,
    %cst_6 = arith.constant 0.000000e+00 : f32
    %6 = vector.broadcast %cst_6 : f32 to vector<9x8xf32>
    %c73_7 = arith.constant 73 : index
    %c0_8 = arith.constant 0 : index
    %7 = vector.load %arg10[%c73_7, %c0_8] : memref<82x8xf32, #tpu.memory_space<vmem>>, vector<9x8xf32>
    tpu.vector_store %arg10[%c73_7, %c0_8], %6 {strides = array<i32>} : memref<82x8xf32, #tpu.memory_space<vmem>>, vector<9x8xf32>,
    %c0_9 = arith.constant 0 : index
    %c0_10 = arith.constant 0 : index
    %c0_11 = arith.constant 0 : index
    %8 = vector.load %arg1[%c0_9, %c0_10, %c0_11] : memref<1x64x16xbf16, #tpu.memory_space<vmem>>, vector<1x64x16xbf16>
    %9 = vector.shape_cast %8 : vector<1x64x16xbf16> to vector<64x16xbf16>
    %10 = vector.extract_strided_slice %9 {offsets = [0, 0], sizes = [64, 4], strides = [1, 1]} : vector<64x16xbf16> to vector<64x4xbf16>
    %11 = vector.extract_strided_slice %9 {offsets = [0, 4], sizes = [64, 4], strides = [1, 1]} : vector<64x16xbf16> to vector<64x4xbf16>
    %12 = arith.maximumf %10, %11 : vector<64x4xbf16>
    %13 = vector.extract_strided_slice %9 {offsets = [0, 8], sizes = [64, 4], strides = [1, 1]} : vector<64x16xbf16> to vector<64x4xbf16>
    %14 = vector.extract_strided_slice %9 {offsets = [0, 12], sizes = [64, 4], strides = [1, 1]} : vector<64x16xbf16> to vector<64x4xbf16>
    %15 = arith.maximumf %13, %14 : vector<64x4xbf16>
    %16 = arith.maximumf %12, %15 : vector<64x4xbf16>
    %17 = arith.extf %16 : vector<64x4xbf16> to vector<64x4xf32>
    %c9 = arith.constant 9 : index
    %c0_12 = arith.constant 0 : index
    %18 = vector.load %arg9[%c9, %c0_12] : memref<82x4xf32, #tpu.memory_space<vmem>>, vector<64x4xf32>
    tpu.vector_store %arg9[%c9, %c0_12], %17 {strides = array<i32>} : memref<82x4xf32, #tpu.memory_space<vmem>>, vector<64x4xf32>,
    %19 = tpu.iota {dimensions = array<i32: 0>} : vector<64x1xi32>
    %c8_i32 = arith.constant 8 : i32
    %c0_i32 = arith.constant 0 : i32
    %20 = arith.cmpi eq, %c8_i32, %c0_i32 : i32
    %c1_i32 = arith.constant 1 : i32
    %21 = arith.select %20, %c1_i32, %c8_i32 : i32
    %22 = vector.broadcast %21 : i32 to vector<64x1xi32>
    %23 = arith.remsi %19, %22 : vector<64x1xi32>
    %c0_i32_13 = arith.constant 0 : i32
    %24 = vector.broadcast %c0_i32_13 : i32 to vector<64x1xi32>
    %25 = arith.cmpi ne, %23, %24 : vector<64x1xi32>
    %c0_i32_14 = arith.constant 0 : i32
    %26 = vector.broadcast %c0_i32_14 : i32 to vector<64x1xi32>
    %27 = arith.cmpi slt, %23, %26 : vector<64x1xi32>
    %c0_i32_15 = arith.constant 0 : i32
    %28 = arith.cmpi slt, %21, %c0_i32_15 : i32
    %29 = vector.broadcast %28 : i1 to vector<64x1xi1>
    %30 = vector.broadcast %29 : vector<64x1xi1> to vector<64x1xi1>
    %31 = arith.xori %27, %30 : vector<64x1xi1>
    %32 = arith.andi %31, %25 : vector<64x1xi1>
    %33 = vector.broadcast %21 : i32 to vector<64x1xi32>
    %34 = arith.addi %23, %33 : vector<64x1xi32>
    %35 = arith.select %32, %34, %23 : vector<64x1xi1>, vector<64x1xi32>
    %c0_i32_16 = arith.constant 0 : i32
    %36 = vector.broadcast %c0_i32_16 : i32 to vector<64x1xi32>
    %37 = arith.cmpi ne, %35, %36 : vector<64x1xi32>
    %c7_i32 = arith.constant 7 : i32
    %38 = vector.broadcast %c7_i32 : i32 to vector<64x1xi32>
    %39 = arith.cmpi ne, %35, %38 : vector<64x1xi32>
    %40 = vector.shape_cast %37 : vector<64x1xi1> to vector<64x1xi1>
    %41 = vector.broadcast %40 : vector<64x1xi1> to vector<64x4xi1>
    %42 = vector.shape_cast %39 : vector<64x1xi1> to vector<64x1xi1>
    %43 = vector.broadcast %42 : vector<64x1xi1> to vector<64x4xi1>
    %c0_17 = arith.constant 0 : index
    %c0_18 = arith.constant 0 : index
    %44 = vector.load %arg9[%c0_17, %c0_18] : memref<82x4xf32, #tpu.memory_space<vmem>>, vector<64x4xf32>
    %cst_19 = arith.constant 0.000000e+00 : f32
    %45 = vector.broadcast %cst_19 : f32 to vector<64x4xf32>
    %46 = arith.select %41, %44, %45 : vector<64x4xi1>, vector<64x4xf32>
    %47 = arith.truncf %46 : vector<64x4xf32> to vector<64x4xbf16>
    %c1 = arith.constant 1 : index
    %c0_20 = arith.constant 0 : index
    %48 = vector.load %arg9[%c1, %c0_20] : memref<82x4xf32, #tpu.memory_space<vmem>>, vector<64x4xf32>
    %49 = arith.truncf %48 : vector<64x4xf32> to vector<64x4xbf16>
    %c2 = arith.constant 2 : index
    %c0_21 = arith.constant 0 : index
    %50 = vector.load %arg9[%c2, %c0_21] : memref<82x4xf32, #tpu.memory_space<vmem>>, vector<64x4xf32>
    %cst_22 = arith.constant 0.000000e+00 : f32
    %51 = vector.broadcast %cst_22 : f32 to vector<64x4xf32>
    %52 = arith.select %43, %50, %51 : vector<64x4xi1>, vector<64x4xf32>
    %53 = arith.truncf %52 : vector<64x4xf32> to vector<64x4xbf16>
    %54 = tpu.concatenate %47, %49, %53 in 1 : vector<64x4xbf16>, vector<64x4xbf16>, vector<64x4xbf16> -> vector<64x12xbf16>
    %c0_23 = arith.constant 0 : index
    %c0_24 = arith.constant 0 : index
    %c0_25 = arith.constant 0 : index
    %55 = vector.load %arg2[%c0_23, %c0_24, %c0_25] : memref<3x12x8xbf16, #tpu.memory_space<vmem>>, vector<1x12x8xbf16>
    %56 = vector.shape_cast %55 : vector<1x12x8xbf16> to vector<12x8xbf16>
    %cst_26 = arith.constant dense<0.000000e+00> : vector<64x8xf32>
    %57 = tpu.matmul %54, %56, %cst_26 {dimension_numbers = #tpu.dot_dimension_numbers<[1], [0], [0], [1], [0, 0, 1, 1], [], []>} : vector<64x12xbf16>, vector<12x8xbf16>, vector<64x8xf32> -> vector<64x8xf32>
    %c8 = arith.constant 8 : index
    %c0_27 = arith.constant 0 : index
    %58 = vector.load %arg9[%c8, %c0_27] : memref<82x4xf32, #tpu.memory_space<vmem>>, vector<64x4xf32>
    %cst_28 = arith.constant 0.000000e+00 : f32
    %59 = vector.broadcast %cst_28 : f32 to vector<64x4xf32>
    %60 = arith.select %41, %58, %59 : vector<64x4xi1>, vector<64x4xf32>
    %61 = arith.truncf %60 : vector<64x4xf32> to vector<64x4xbf16>
    %c9_29 = arith.constant 9 : index
    %c0_30 = arith.constant 0 : index
    %62 = vector.load %arg9[%c9_29, %c0_30] : memref<82x4xf32, #tpu.memory_space<vmem>>, vector<64x4xf32>
    %63 = arith.truncf %62 : vector<64x4xf32> to vector<64x4xbf16>
    %c10 = arith.constant 10 : index
    %c0_31 = arith.constant 0 : index
    %64 = vector.load %arg9[%c10, %c0_31] : memref<82x4xf32, #tpu.memory_space<vmem>>, vector<64x4xf32>
    %cst_32 = arith.constant 0.000000e+00 : f32
    %65 = vector.broadcast %cst_32 : f32 to vector<64x4xf32>
    %66 = arith.select %43, %64, %65 : vector<64x4xi1>, vector<64x4xf32>
    %67 = arith.truncf %66 : vector<64x4xf32> to vector<64x4xbf16>
    %68 = tpu.concatenate %61, %63, %67 in 1 : vector<64x4xbf16>, vector<64x4xbf16>, vector<64x4xbf16> -> vector<64x12xbf16>
    %c1_33 = arith.constant 1 : index
    %c0_34 = arith.constant 0 : index
    %c0_35 = arith.constant 0 : index
    %69 = vector.load %arg2[%c1_33, %c0_34, %c0_35] : memref<3x12x8xbf16, #tpu.memory_space<vmem>>, vector<1x12x8xbf16>
    %70 = vector.shape_cast %69 : vector<1x12x8xbf16> to vector<12x8xbf16>
    %cst_36 = arith.constant dense<0.000000e+00> : vector<64x8xf32>
    %71 = tpu.matmul %68, %70, %cst_36 {dimension_numbers = #tpu.dot_dimension_numbers<[1], [0], [0], [1], [0, 0, 1, 1], [], []>} : vector<64x12xbf16>, vector<12x8xbf16>, vector<64x8xf32> -> vector<64x8xf32>
    %72 = arith.addf %57, %71 : vector<64x8xf32>
    %c16 = arith.constant 16 : index
    %c0_37 = arith.constant 0 : index
    %73 = vector.load %arg9[%c16, %c0_37] : memref<82x4xf32, #tpu.memory_space<vmem>>, vector<64x4xf32>
    %cst_38 = arith.constant 0.000000e+00 : f32
    %74 = vector.broadcast %cst_38 : f32 to vector<64x4xf32>
    %75 = arith.select %41, %73, %74 : vector<64x4xi1>, vector<64x4xf32>
    %76 = arith.truncf %75 : vector<64x4xf32> to vector<64x4xbf16>
    %c17 = arith.constant 17 : index
    %c0_39 = arith.constant 0 : index
    %77 = vector.load %arg9[%c17, %c0_39] : memref<82x4xf32, #tpu.memory_space<vmem>>, vector<64x4xf32>
    %78 = arith.truncf %77 : vector<64x4xf32> to vector<64x4xbf16>
    %c18 = arith.constant 18 : index
    %c0_40 = arith.constant 0 : index
    %79 = vector.load %arg9[%c18, %c0_40] : memref<82x4xf32, #tpu.memory_space<vmem>>, vector<64x4xf32>
    %cst_41 = arith.constant 0.000000e+00 : f32
    %80 = vector.broadcast %cst_41 : f32 to vector<64x4xf32>
    %81 = arith.select %43, %79, %80 : vector<64x4xi1>, vector<64x4xf32>
    %82 = arith.truncf %81 : vector<64x4xf32> to vector<64x4xbf16>
    %83 = tpu.concatenate %76, %78, %82 in 1 : vector<64x4xbf16>, vector<64x4xbf16>, vector<64x4xbf16> -> vector<64x12xbf16>
    %c2_42 = arith.constant 2 : index
    %c0_43 = arith.constant 0 : index
    %c0_44 = arith.constant 0 : index
    %84 = vector.load %arg2[%c2_42, %c0_43, %c0_44] : memref<3x12x8xbf16, #tpu.memory_space<vmem>>, vector<1x12x8xbf16>
    %85 = vector.shape_cast %84 : vector<1x12x8xbf16> to vector<12x8xbf16>
    %cst_45 = arith.constant dense<0.000000e+00> : vector<64x8xf32>
    %86 = tpu.matmul %83, %85, %cst_45 {dimension_numbers = #tpu.dot_dimension_numbers<[1], [0], [0], [1], [0, 0, 1, 1], [], []>} : vector<64x12xbf16>, vector<12x8xbf16>, vector<64x8xf32> -> vector<64x8xf32>
    %87 = arith.addf %72, %86 : vector<64x8xf32>
    %c0_46 = arith.constant 0 : index
    %c0_47 = arith.constant 0 : index
    %88 = vector.load %arg4[%c0_46, %c0_47] : memref<1x8xf32, #tpu.memory_space<vmem>>, vector<1x8xf32>
    %89 = vector.broadcast %88 : vector<1x8xf32> to vector<64x8xf32>
    %90 = arith.mulf %87, %89 : vector<64x8xf32>
    %c0_48 = arith.constant 0 : index
    %c0_49 = arith.constant 0 : index
    %91 = vector.load %arg5[%c0_48, %c0_49] : memref<1x8xf32, #tpu.memory_space<vmem>>, vector<1x8xf32>
    %92 = vector.broadcast %91 : vector<1x8xf32> to vector<64x8xf32>
    %93 = arith.addf %90, %92 : vector<64x8xf32>
    %cst_50 = arith.constant 0.000000e+00 : f32
    %94 = vector.broadcast %cst_50 : f32 to vector<64x8xf32>
    %95 = arith.maximumf %93, %94 : vector<64x8xf32>
    %c9_51 = arith.constant 9 : index
    %c0_52 = arith.constant 0 : index
    %96 = vector.load %arg10[%c9_51, %c0_52] : memref<82x8xf32, #tpu.memory_space<vmem>>, vector<64x8xf32>
    tpu.vector_store %arg10[%c9_51, %c0_52], %95 {strides = array<i32>} : memref<82x8xf32, #tpu.memory_space<vmem>>, vector<64x8xf32>,
    %97 = vector.shape_cast %37 : vector<64x1xi1> to vector<64x1xi1>
    %98 = vector.broadcast %97 : vector<64x1xi1> to vector<64x8xi1>
    %99 = vector.shape_cast %39 : vector<64x1xi1> to vector<64x1xi1>
    %100 = vector.broadcast %99 : vector<64x1xi1> to vector<64x8xi1>
    %c0_53 = arith.constant 0 : index
    %c0_54 = arith.constant 0 : index
    %101 = vector.load %arg10[%c0_53, %c0_54] : memref<82x8xf32, #tpu.memory_space<vmem>>, vector<64x8xf32>
    %cst_55 = arith.constant 0.000000e+00 : f32
    %102 = vector.broadcast %cst_55 : f32 to vector<64x8xf32>
    %103 = arith.select %98, %101, %102 : vector<64x8xi1>, vector<64x8xf32>
    %104 = arith.truncf %103 : vector<64x8xf32> to vector<64x8xbf16>
    %c1_56 = arith.constant 1 : index
    %c0_57 = arith.constant 0 : index
    %105 = vector.load %arg10[%c1_56, %c0_57] : memref<82x8xf32, #tpu.memory_space<vmem>>, vector<64x8xf32>
    %106 = arith.truncf %105 : vector<64x8xf32> to vector<64x8xbf16>
    %c2_58 = arith.constant 2 : index
    %c0_59 = arith.constant 0 : index
    %107 = vector.load %arg10[%c2_58, %c0_59] : memref<82x8xf32, #tpu.memory_space<vmem>>, vector<64x8xf32>
    %cst_60 = arith.constant 0.000000e+00 : f32
    %108 = vector.broadcast %cst_60 : f32 to vector<64x8xf32>
    %109 = arith.select %100, %107, %108 : vector<64x8xi1>, vector<64x8xf32>
    %110 = arith.truncf %109 : vector<64x8xf32> to vector<64x8xbf16>
    %111 = tpu.concatenate %104, %106, %110 in 1 : vector<64x8xbf16>, vector<64x8xbf16>, vector<64x8xbf16> -> vector<64x24xbf16>
    %c0_61 = arith.constant 0 : index
    %c0_62 = arith.constant 0 : index
    %c0_63 = arith.constant 0 : index
    %112 = vector.load %arg3[%c0_61, %c0_62, %c0_63] : memref<3x24x8xbf16, #tpu.memory_space<vmem>>, vector<1x24x8xbf16>
    %113 = vector.shape_cast %112 : vector<1x24x8xbf16> to vector<24x8xbf16>
    %cst_64 = arith.constant dense<0.000000e+00> : vector<64x8xf32>
    %114 = tpu.matmul %111, %113, %cst_64 {dimension_numbers = #tpu.dot_dimension_numbers<[1], [0], [0], [1], [0, 0, 1, 1], [], []>} : vector<64x24xbf16>, vector<24x8xbf16>, vector<64x8xf32> -> vector<64x8xf32>
    %c8_65 = arith.constant 8 : index
    %c0_66 = arith.constant 0 : index
    %115 = vector.load %arg10[%c8_65, %c0_66] : memref<82x8xf32, #tpu.memory_space<vmem>>, vector<64x8xf32>
    %cst_67 = arith.constant 0.000000e+00 : f32
    %116 = vector.broadcast %cst_67 : f32 to vector<64x8xf32>
    %117 = arith.select %98, %115, %116 : vector<64x8xi1>, vector<64x8xf32>
    %118 = arith.truncf %117 : vector<64x8xf32> to vector<64x8xbf16>
    %c9_68 = arith.constant 9 : index
    %c0_69 = arith.constant 0 : index
    %119 = vector.load %arg10[%c9_68, %c0_69] : memref<82x8xf32, #tpu.memory_space<vmem>>, vector<64x8xf32>
    %120 = arith.truncf %119 : vector<64x8xf32> to vector<64x8xbf16>
    %c10_70 = arith.constant 10 : index
    %c0_71 = arith.constant 0 : index
    %121 = vector.load %arg10[%c10_70, %c0_71] : memref<82x8xf32, #tpu.memory_space<vmem>>, vector<64x8xf32>
    %cst_72 = arith.constant 0.000000e+00 : f32
    %122 = vector.broadcast %cst_72 : f32 to vector<64x8xf32>
    %123 = arith.select %100, %121, %122 : vector<64x8xi1>, vector<64x8xf32>
    %124 = arith.truncf %123 : vector<64x8xf32> to vector<64x8xbf16>
    %125 = tpu.concatenate %118, %120, %124 in 1 : vector<64x8xbf16>, vector<64x8xbf16>, vector<64x8xbf16> -> vector<64x24xbf16>
    %c1_73 = arith.constant 1 : index
    %c0_74 = arith.constant 0 : index
    %c0_75 = arith.constant 0 : index
    %126 = vector.load %arg3[%c1_73, %c0_74, %c0_75] : memref<3x24x8xbf16, #tpu.memory_space<vmem>>, vector<1x24x8xbf16>
    %127 = vector.shape_cast %126 : vector<1x24x8xbf16> to vector<24x8xbf16>
    %cst_76 = arith.constant dense<0.000000e+00> : vector<64x8xf32>
    %128 = tpu.matmul %125, %127, %cst_76 {dimension_numbers = #tpu.dot_dimension_numbers<[1], [0], [0], [1], [0, 0, 1, 1], [], []>} : vector<64x24xbf16>, vector<24x8xbf16>, vector<64x8xf32> -> vector<64x8xf32>
    %129 = arith.addf %114, %128 : vector<64x8xf32>
    %c16_77 = arith.constant 16 : index
    %c0_78 = arith.constant 0 : index
    %130 = vector.load %arg10[%c16_77, %c0_78] : memref<82x8xf32, #tpu.memory_space<vmem>>, vector<64x8xf32>
    %cst_79 = arith.constant 0.000000e+00 : f32
    %131 = vector.broadcast %cst_79 : f32 to vector<64x8xf32>
    %132 = arith.select %98, %130, %131 : vector<64x8xi1>, vector<64x8xf32>
    %133 = arith.truncf %132 : vector<64x8xf32> to vector<64x8xbf16>
    %c17_80 = arith.constant 17 : index
    %c0_81 = arith.constant 0 : index
    %134 = vector.load %arg10[%c17_80, %c0_81] : memref<82x8xf32, #tpu.memory_space<vmem>>, vector<64x8xf32>
    %135 = arith.truncf %134 : vector<64x8xf32> to vector<64x8xbf16>
    %c18_82 = arith.constant 18 : index
    %c0_83 = arith.constant 0 : index
    %136 = vector.load %arg10[%c18_82, %c0_83] : memref<82x8xf32, #tpu.memory_space<vmem>>, vector<64x8xf32>
    %cst_84 = arith.constant 0.000000e+00 : f32
    %137 = vector.broadcast %cst_84 : f32 to vector<64x8xf32>
    %138 = arith.select %100, %136, %137 : vector<64x8xi1>, vector<64x8xf32>
    %139 = arith.truncf %138 : vector<64x8xf32> to vector<64x8xbf16>
    %140 = tpu.concatenate %133, %135, %139 in 1 : vector<64x8xbf16>, vector<64x8xbf16>, vector<64x8xbf16> -> vector<64x24xbf16>
    %c2_85 = arith.constant 2 : index
    %c0_86 = arith.constant 0 : index
    %c0_87 = arith.constant 0 : index
    %141 = vector.load %arg3[%c2_85, %c0_86, %c0_87] : memref<3x24x8xbf16, #tpu.memory_space<vmem>>, vector<1x24x8xbf16>
    %142 = vector.shape_cast %141 : vector<1x24x8xbf16> to vector<24x8xbf16>
    %cst_88 = arith.constant dense<0.000000e+00> : vector<64x8xf32>
    %143 = tpu.matmul %140, %142, %cst_88 {dimension_numbers = #tpu.dot_dimension_numbers<[1], [0], [0], [1], [0, 0, 1, 1], [], []>} : vector<64x24xbf16>, vector<24x8xbf16>, vector<64x8xf32> -> vector<64x8xf32>
    %144 = arith.addf %129, %143 : vector<64x8xf32>
    %c0_89 = arith.constant 0 : index
    %c0_90 = arith.constant 0 : index
    %145 = vector.load %arg6[%c0_89, %c0_90] : memref<1x8xf32, #tpu.memory_space<vmem>>, vector<1x8xf32>
    %146 = vector.broadcast %145 : vector<1x8xf32> to vector<64x8xf32>
    %147 = arith.mulf %144, %146 : vector<64x8xf32>
    %c0_91 = arith.constant 0 : index
    %c0_92 = arith.constant 0 : index
    %148 = vector.load %arg7[%c0_91, %c0_92] : memref<1x8xf32, #tpu.memory_space<vmem>>, vector<1x8xf32>
    %149 = vector.broadcast %148 : vector<1x8xf32> to vector<64x8xf32>
    %150 = arith.addf %147, %149 : vector<64x8xf32>
    %cst_93 = arith.constant 0.000000e+00 : f32
    %151 = vector.broadcast %cst_93 : f32 to vector<64x8xf32>
    %152 = arith.maximumf %150, %151 : vector<64x8xf32>
    %153 = arith.truncf %152 : vector<64x8xf32> to vector<64x8xbf16>
    %c0_94 = arith.constant 0 : index
    %c0_95 = arith.constant 0 : index
    %c0_96 = arith.constant 0 : index
    %154 = vector.load %arg8[%c0_94, %c0_95, %c0_96] : memref<1x64x8xbf16, #tpu.memory_space<vmem>>, vector<1x64x8xbf16>
    %155 = vector.shape_cast %154 : vector<1x64x8xbf16> to vector<64x8xbf16>
    %156 = vector.shape_cast %153 : vector<64x8xbf16> to vector<1x64x8xbf16>
    tpu.vector_store %arg8[%c0_94, %c0_95, %c0_96], %156 {strides = array<i32>} : memref<1x64x8xbf16, #tpu.memory_space<vmem>>, vector<1x64x8xbf16>,
    return
  }
  func.func @transform_0(%arg0: i32) -> (i32, i32, i32) {
    %c0_i32 = arith.constant 0 : i32
    %c0_i32_0 = arith.constant 0 : i32
    %c0_i32_1 = arith.constant 0 : i32
    return %arg0, %c0_i32, %c0_i32_0 : i32, i32, i32
  }
  func.func @transform_1(%arg0: i32) -> (i32, i32, i32) {
    %c0_i32 = arith.constant 0 : i32
    %c0_i32_0 = arith.constant 0 : i32
    %c0_i32_1 = arith.constant 0 : i32
    %c0_i32_2 = arith.constant 0 : i32
    return %c0_i32, %c0_i32_0, %c0_i32_1 : i32, i32, i32
  }
  func.func @transform_2(%arg0: i32) -> (i32, i32, i32) {
    %c0_i32 = arith.constant 0 : i32
    %c0_i32_0 = arith.constant 0 : i32
    %c0_i32_1 = arith.constant 0 : i32
    %c0_i32_2 = arith.constant 0 : i32
    return %c0_i32, %c0_i32_0, %c0_i32_1 : i32, i32, i32
  }
  func.func @transform_3(%arg0: i32) -> (i32, i32) {
    %c0_i32 = arith.constant 0 : i32
    %c0_i32_0 = arith.constant 0 : i32
    %c0_i32_1 = arith.constant 0 : i32
    return %c0_i32, %c0_i32_0 : i32, i32
  }
  func.func @transform_4(%arg0: i32) -> (i32, i32) {
    %c0_i32 = arith.constant 0 : i32
    %c0_i32_0 = arith.constant 0 : i32
    %c0_i32_1 = arith.constant 0 : i32
    return %c0_i32, %c0_i32_0 : i32, i32
  }
  func.func @transform_5(%arg0: i32) -> (i32, i32) {
    %c0_i32 = arith.constant 0 : i32
    %c0_i32_0 = arith.constant 0 : i32
    %c0_i32_1 = arith.constant 0 : i32
    return %c0_i32, %c0_i32_0 : i32, i32
  }
  func.func @transform_6(%arg0: i32) -> (i32, i32) {
    %c0_i32 = arith.constant 0 : i32
    %c0_i32_0 = arith.constant 0 : i32
    %c0_i32_1 = arith.constant 0 : i32
    return %c0_i32, %c0_i32_0 : i32, i32
  }
  func.func @transform_7(%arg0: i32) -> (i32, i32, i32) {
    %c0_i32 = arith.constant 0 : i32
    %c0_i32_0 = arith.constant 0 : i32
    %c0_i32_1 = arith.constant 0 : i32
    return %arg0, %c0_i32, %c0_i32_0 : i32, i32, i32
  }
}

</mosaic_0001>

<llo_original>
// kernel: tpu_custom_call.1
$region0: #{tpu_custom_call.1}
  #allocation0 [shape = 'u32[]', space=smem, size = 0x4, offset = 0x4, fixed_abs, tag = 'smem constant byte address 0x4 - core index']
  #allocation1 [shape = 'u32[72,128]{1,0:T(1,128)}', space=vmem, size = 0x9000, scoped, tag = 'internal scratch']
  #allocation2 [shape = 'f32[82,4]{1,0:T(8,128)}', space=vmem, size = 0xb000, scoped, tag = 'scratch operand']
  #allocation3 [shape = 'f32[82,8]{1,0:T(8,128)}', space=vmem, size = 0xb000, scoped, tag = 'scratch operand']
  %s0 = inlined_call_operand.vmem [shape: bf16[2,64,16], index: 0, kind: input, shape index: {}]
  %s1 = inlined_call_operand.vmem [shape: bf16[3,12,8], index: 1, kind: input, shape index: {}]
  %s2 = inlined_call_operand.vmem [shape: bf16[3,24,8], index: 2, kind: input, shape index: {}]
  %s3 = inlined_call_operand.vmem [shape: f32[1,8], index: 3, kind: input, shape index: {}]
  %s4 = inlined_call_operand.vmem [shape: f32[1,8], index: 4, kind: input, shape index: {}]
  %s5 = inlined_call_operand.vmem [shape: f32[1,8], index: 5, kind: input, shape index: {}]
  %s6 = inlined_call_operand.vmem [shape: f32[1,8], index: 6, kind: input, shape index: {}]
  %s7 = inlined_call_operand.vmem [shape: bf16[2,64,8], index: 7, kind: output, shape index: {}]
  %s8 = sld [smem:[#allocation0]]
  $region61: #{tpu_custom_call.1} parent=0
    _
  %s10 = ssub.s32 1, %s8
  %s11 = scalar_select 0, %s10, %s8
  loop: start=0, step=1, limit=4
  $region2: #{tpu_custom_call.1} parent=0 // loop_pre_header
    _
  $region3: #{tpu_custom_call.1} parent=0 // loop_header
    %s13 = sphi 0, %s17
    %p14 = scmp.ge.s32.totalorder %s13, 4
    %s23 = sphi 0, %s25
    %s26 = sphi 0, %s23
    %s27 = sphi 0, %s26
    %s43 = sphi 0, %s27
    %s47 = sphi 0, %s47
    %s49 = sphi 0, %s47
    %s50 = sphi 0, %s49
    %s64 = sphi 0, %s50
    %s68 = sphi 0, %s68
    %s70 = sphi 0, %s68
    %s71 = sphi 0, %s70
    %s85 = sphi 0, %s71
    %s89 = sphi 0, %s89
    %s91 = sphi 0, %s89
    %s92 = sphi 0, %s91
    %s106 = sphi 0, %s92
    %s110 = sphi 0, %s110
    %s112 = sphi 0, %s110
    %s113 = sphi 0, %s112
    %s127 = sphi 0, %s113
    %s131 = sphi 0, %s131
    %s133 = sphi 0, %s131
    %s134 = sphi 0, %s133
    %s148 = sphi 0, %s134
    %s152 = sphi 0, %s152
    %s154 = sphi 0, %s152
    %s155 = sphi 0, %s154
    %s169 = sphi 0, %s155
    %s175 = sphi 0, %s177
    %s178 = sphi 0, %s175
    %s179 = sphi 0, %s178
    %s195 = sphi 0, %s179
  $region4: #{tpu_custom_call.1} parent=0 // loop_header_branch
    %16 = sbr.rel (%p14) target = $region8
  $region5: #{tpu_custom_call.1} parent=0 // loop_body
    %s18 = ssub.s32 %s13, 1
    %s19 = ssub.s32 %s13, 2
    %s20 = sadd.s32 %s13, 1
    %s21 = ssub.s32 %s13, %s20
    %p22 = scmp.eq.s32.totalorder %s21, 0
    %s24 = sadd.s32 %s23, 1
    %s25 = scalar_select %p22, %s23, %s24
    %p28 = pneg %p22
    %p29 = scmp.eq.s32.totalorder %s13, 1
    %p30 = por %p28, %p29
    %p31 = scmp.ne.s32.totalorder %s23, %s26
    %p32 = scmp.eq.s32.totalorder %s13, 0
    %p33 = por %p31, %p32
    %p34 = scmp.ne.s32.totalorder %s23, %s26
    %p35 = scmp.eq.s32.totalorder %s18, 1
    %p36 = por %p34, %p35
    %p37 = scmp.ne.s32.totalorder %s26, %s27
    %p38 = scmp.eq.s32.totalorder %s18, 0
    %p39 = por %p37, %p38
    %p40 = scmp.ne.s32.totalorder %s26, %s27
    %p41 = scmp.eq.s32.totalorder %s19, 1
    %p42 = por %p40, %p41
    %p44 = scmp.ne.s32.totalorder %s27, %s43
    %p45 = scmp.eq.s32.totalorder %s19, 0
    %p46 = por %p44, %p45
    %s48 = sadd.s32 %s47, 1
    %p51 = scmp.eq.s32.totalorder %s13, 1
    %p52 = scmp.ne.s32.totalorder %s47, %s49
    %p53 = scmp.eq.s32.totalorder %s13, 0
    %p54 = por %p52, %p53
    %p55 = scmp.ne.s32.totalorder %s47, %s49
    %p56 = scmp.eq.s32.totalorder %s18, 1
    %p57 = por %p55, %p56
    %p58 = scmp.ne.s32.totalorder %s49, %s50
    %p59 = scmp.eq.s32.totalorder %s18, 0
    %p60 = por %p58, %p59
    %p61 = scmp.ne.s32.totalorder %s49, %s50
    %p62 = scmp.eq.s32.totalorder %s19, 1
    %p63 = por %p61, %p62
    %p65 = scmp.ne.s32.totalorder %s50, %s64
    %p66 = scmp.eq.s32.totalorder %s19, 0
    %p67 = por %p65, %p66
    %s69 = sadd.s32 %s68, 1
    %p72 = scmp.eq.s32.totalorder %s13, 1
    %p73 = scmp.ne.s32.totalorder %s68, %s70
    %p74 = scmp.eq.s32.totalorder %s13, 0
    %p75 = por %p73, %p74
    %p76 = scmp.ne.s32.totalorder %s68, %s70
    %p77 = scmp.eq.s32.totalorder %s18, 1
    %p78 = por %p76, %p77
    %p79 = scmp.ne.s32.totalorder %s70, %s71
    %p80 = scmp.eq.s32.totalorder %s18, 0
    %p81 = por %p79, %p80
    %p82 = scmp.ne.s32.totalorder %s70, %s71
    %p83 = scmp.eq.s32.totalorder %s19, 1
    %p84 = por %p82, %p83
    %p86 = scmp.ne.s32.totalorder %s71, %s85
    %p87 = scmp.eq.s32.totalorder %s19, 0
    %p88 = por %p86, %p87
    %s90 = sadd.s32 %s89, 1
    %p93 = scmp.eq.s32.totalorder %s13, 1
    %p94 = scmp.ne.s32.totalorder %s89, %s91
    %p95 = scmp.eq.s32.totalorder %s13, 0
    %p96 = por %p94, %p95
    %p97 = scmp.ne.s32.totalorder %s89, %s91
    %p98 = scmp.eq.s32.totalorder %s18, 1
    %p99 = por %p97, %p98
    %p100 = scmp.ne.s32.totalorder %s91, %s92
    %p101 = scmp.eq.s32.totalorder %s18, 0
    %p102 = por %p100, %p101
    %p103 = scmp.ne.s32.totalorder %s91, %s92
    %p104 = scmp.eq.s32.totalorder %s19, 1
    %p105 = por %p103, %p104
    %p107 = scmp.ne.s32.totalorder %s92, %s106
    %p108 = scmp.eq.s32.totalorder %s19, 0
    %p109 = por %p107, %p108
    %s111 = sadd.s32 %s110, 1
    %p114 = scmp.eq.s32.totalorder %s13, 1
    %p115 = scmp.ne.s32.totalorder %s110, %s112
    %p116 = scmp.eq.s32.totalorder %s13, 0
    %p117 = por %p115, %p116
    %p118 = scmp.ne.s32.totalorder %s110, %s112
    %p119 = scmp.eq.s32.totalorder %s18, 1
    %p120 = por %p118, %p119
    %p121 = scmp.ne.s32.totalorder %s112, %s113
    %p122 = scmp.eq.s32.totalorder %s18, 0
    %p123 = por %p121, %p122
    %p124 = scmp.ne.s32.totalorder %s112, %s113
    %p125 = scmp.eq.s32.totalorder %s19, 1
    %p126 = por %p124, %p125
    %p128 = scmp.ne.s32.totalorder %s113, %s127
    %p129 = scmp.eq.s32.totalorder %s19, 0
    %p130 = por %p128, %p129
    %s132 = sadd.s32 %s131, 1
    %p135 = scmp.eq.s32.totalorder %s13, 1
    %p136 = scmp.ne.s32.totalorder %s131, %s133
    %p137 = scmp.eq.s32.totalorder %s13, 0
    %p138 = por %p136, %p137
    %p139 = scmp.ne.s32.totalorder %s131, %s133
    %p140 = scmp.eq.s32.totalorder %s18, 1
    %p141 = por %p139, %p140
    %p142 = scmp.ne.s32.totalorder %s133, %s134
    %p143 = scmp.eq.s32.totalorder %s18, 0
    %p144 = por %p142, %p143
    %p145 = scmp.ne.s32.totalorder %s133, %s134
    %p146 = scmp.eq.s32.totalorder %s19, 1
    %p147 = por %p145, %p146
    %p149 = scmp.ne.s32.totalorder %s134, %s148
    %p150 = scmp.eq.s32.totalorder %s19, 0
    %p151 = por %p149, %p150
    %s153 = sadd.s32 %s152, 1
    %p156 = scmp.eq.s32.totalorder %s13, 1
    %p157 = scmp.ne.s32.totalorder %s152, %s154
    %p158 = scmp.eq.s32.totalorder %s13, 0
    %p159 = por %p157, %p158
    %p160 = scmp.ne.s32.totalorder %s152, %s154
    %p161 = scmp.eq.s32.totalorder %s18, 1
    %p162 = por %p160, %p161
    %p163 = scmp.ne.s32.totalorder %s154, %s155
    %p164 = scmp.eq.s32.totalorder %s18, 0
    %p165 = por %p163, %p164
    %p166 = scmp.ne.s32.totalorder %s154, %s155
    %p167 = scmp.eq.s32.totalorder %s19, 1
    %p168 = por %p166, %p167
    %p170 = scmp.ne.s32.totalorder %s155, %s169
    %p171 = scmp.eq.s32.totalorder %s19, 0
    %p172 = por %p170, %p171
    %s173 = ssub.s32 %s13, %s20
    %p174 = scmp.eq.s32.totalorder %s173, 0
    %s176 = sadd.s32 %s175, 1
    %s177 = scalar_select %p174, %s175, %s176
    %p180 = pneg %p174
    %p181 = scmp.eq.s32.totalorder %s13, 1
    %p182 = por %p180, %p181
    %p183 = scmp.ne.s32.totalorder %s175, %s178
    %p184 = scmp.eq.s32.totalorder %s13, 0
    %p185 = por %p183, %p184
    %p186 = scmp.ne.s32.totalorder %s175, %s178
    %p187 = scmp.eq.s32.totalorder %s18, 1
    %p188 = por %p186, %p187
    %p189 = scmp.ne.s32.totalorder %s178, %s179
    %p190 = scmp.eq.s32.totalorder %s18, 0
    %p191 = por %p189, %p190
    %p192 = scmp.ne.s32.totalorder %s178, %s179
    %p193 = scmp.eq.s32.totalorder %s19, 1
    %p194 = por %p192, %p193
    %p196 = scmp.ne.s32.totalorder %s179, %s195
    %p197 = scmp.eq.s32.totalorder %s19, 0
    %p198 = por %p196, %p197
    %p199 = scmp.le.s32.totalorder 1, %s13
    %p200 = scmp.lt.s32.totalorder %s13, 3
    %p201 = pnand %p199, %p200
    %p202 = pneg %p201
    // Predicated region
    $region9: #{tpu_custom_call.1} parent=5 // pred_check
      _
    $region10: #{tpu_custom_call.1} parent=5 // pred_check_branch
      %204 = sbr.rel (%p201) target = $region12
    $region11: #{tpu_custom_call.1} parent=5 // pred_region
      %s205 = ssub.s32 %s13, 1
      // Predicated region
      $region13: #{tpu_custom_call.1} parent=11 // pred_check
        %p206 = pneg %p60
      $region14: #{tpu_custom_call.1} parent=11 // pred_check_branch
        %208 = sbr.rel (%p206) target = $region16
      $region15: #{tpu_custom_call.1} parent=11 // pred_region
        _
      $region16: #{tpu_custom_call.1} parent=11 // pred_fallthru
        _
      // Predicated region
      $region17: #{tpu_custom_call.1} parent=11 // pred_check
        %p209 = pneg %p81
      $region18: #{tpu_custom_call.1} parent=11 // pred_check_branch
        %211 = sbr.rel (%p209) target = $region20
      $region19: #{tpu_custom_call.1} parent=11 // pred_region
        _
      $region20: #{tpu_custom_call.1} parent=11 // pred_fallthru
        _
      // Predicated region
      $region21: #{tpu_custom_call.1} parent=11 // pred_check
        %p212 = pneg %p102
      $region22: #{tpu_custom_call.1} parent=11 // pred_check_branch
        %214 = sbr.rel (%p212) target = $region24
      $region23: #{tpu_custom_call.1} parent=11 // pred_region
        _
      $region24: #{tpu_custom_call.1} parent=11 // pred_fallthru
        _
      // Predicated region
      $region25: #{tpu_custom_call.1} parent=11 // pred_check
        %p215 = pneg %p123
      $region26: #{tpu_custom_call.1} parent=11 // pred_check_branch
        %217 = sbr.rel (%p215) target = $region28
      $region27: #{tpu_custom_call.1} parent=11 // pred_region
        _
      $region28: #{tpu_custom_call.1} parent=11 // pred_fallthru
        _
      // Predicated region
      $region29: #{tpu_custom_call.1} parent=11 // pred_check
        %p218 = pneg %p144
      $region30: #{tpu_custom_call.1} parent=11 // pred_check_branch
        %220 = sbr.rel (%p218) target = $region32
      $region31: #{tpu_custom_call.1} parent=11 // pred_region
        _
      $region32: #{tpu_custom_call.1} parent=11 // pred_fallthru
        _
      // Predicated region
      $region33: #{tpu_custom_call.1} parent=11 // pred_check
        %p221 = pneg %p165
      $region34: #{tpu_custom_call.1} parent=11 // pred_check_branch
        %223 = sbr.rel (%p221) target = $region36
      $region35: #{tpu_custom_call.1} parent=11 // pred_region
        _
      $region36: #{tpu_custom_call.1} parent=11 // pred_fallthru
        _
    $region12: #{tpu_custom_call.1} parent=5 // pred_fallthru
      _
    %p224 = scmp.lt.s32.totalorder %s13, 2
    // Predicated region
    $region37: #{tpu_custom_call.1} parent=5 // pred_check
      %p225 = pneg %p224
    $region38: #{tpu_custom_call.1} parent=5 // pred_check_branch
      %227 = sbr.rel (%p225) target = $region40
    $region39: #{tpu_custom_call.1} parent=5 // pred_region
      // Predicated region
      $region41: #{tpu_custom_call.1} parent=39 // pred_check
        %p228 = pneg %p33
      $region42: #{tpu_custom_call.1} parent=39 // pred_check_branch
        %230 = sbr.rel (%p228) target = $region44
      $region43: #{tpu_custom_call.1} parent=39 // pred_region
        %p231 = scmp.lt.s32.totalorder %s13, 1
        %s232 = scalar_select %p231, %s13, 1
        %s233 = smul.addr %s232, 8
        %s234 = smul.addr %s233, 4
        %s235 = scalar_lea.vmem %s0, %s234
      $region44: #{tpu_custom_call.1} parent=39 // pred_fallthru
        _
    $region40: #{tpu_custom_call.1} parent=5 // pred_fallthru
      _
    %p236 = scmp.le.s32.totalorder 1, %s13
    %p237 = scmp.lt.s32.totalorder %s13, 3
    %p238 = pnand %p236, %p237
    %p239 = pneg %p238
    // Predicated region
    $region45: #{tpu_custom_call.1} parent=5 // pred_check
      _
    $region46: #{tpu_custom_call.1} parent=5 // pred_check_branch
      %241 = sbr.rel (%p238) target = $region48
    $region47: #{tpu_custom_call.1} parent=5 // pred_region
      %s242 = ssub.s32 %s13, 1
      %p243 = scmp.lt.s32.totalorder %s18, 1
      %s244 = scalar_select %p243, %s18, 1
      %s245 = smul.addr %s244, 8
      %s246 = smul.addr %s245, 4
      %s247 = scalar_lea.vmem %s0, %s246
      %p248 = pneg %p39
      %p249 = pneg %p36
      %p250 = pneg %p60
      %p251 = pneg %p57
      %p252 = pneg %p81
      %p253 = pneg %p78
      %p254 = pneg %p102
      %p255 = pneg %p99
      %p256 = pneg %p123
      %p257 = pneg %p120
      %p258 = pneg %p144
      %p259 = pneg %p141
      %p260 = pneg %p165
      %p261 = pneg %p162
      %p262 = pneg %p191
      %p263 = pneg %p188
      %p264 = scmp.lt.s32.totalorder %s18, 1
      %s265 = scalar_select %p264, %s18, 1
      %s266 = smul.addr %s265, 8
      %s267 = smul.addr %s266, 4
      %s268 = scalar_lea.vmem %s7, %s267
      %p269 = scmp.lt.s32.totalorder %s18, 1
      %s270 = scalar_select %p269, %s18, 1
      %s271 = smul.addr %s270, 8
      %s272 = smul.addr %s271, 4
      %s273 = scalar_lea.vmem %s0, %s272
      %p274 = scmp.lt.s32.totalorder %s18, 1
      %s275 = scalar_select %p274, %s18, 1
      %s276 = smul.addr %s275, 8
      %s277 = smul.addr %s276, 4
      %s278 = scalar_lea.vmem %s7, %s277
      %vm280 = vcmask 31744
      %281 = vst.msk [vmem:[#allocation2] sm:$0xff] %vm280, 0.0
      %vm282 = vcmask 24576
      %283 = vst.msk [vmem:[#allocation2 + $0x8] sm:$0x1] %vm282, 0.0
      %284 = vst.msk [vmem:[#allocation2 + $0x49] sm:$0xff] %vm280, 0.0
      %285 = vst.msk [vmem:[#allocation2 + $0x51] sm:$0x1] %vm282, 0.0
      %vm286 = vcmask 64512
      %287 = vst.msk [vmem:[#allocation3] sm:$0xff] %vm286, 0.0
      %vm288 = vcmask 57344
      %289 = vst.msk [vmem:[#allocation3 + $0x8] sm:$0x1] %vm288, 0.0
      %290 = vst.msk [vmem:[#allocation3 + $0x49] sm:$0xff] %vm286, 0.0
      %291 = vst.msk [vmem:[#allocation3 + $0x51] sm:$0x1] %vm288, 0.0
      %v292 = vld [vmem:[%s273] sm:$0xf]
      %v293 = vld [vmem:[%s273 + $0x4] sm:$0xf]
      %v294 = vld [vmem:[%s273 + $0x8] sm:$0xf]
      %v295 = vld [vmem:[%s273 + $0xc] sm:$0xf]
      %v296 = vld [vmem:[%s273 + $0x10] sm:$0xf]
      %v297 = vld [vmem:[%s273 + $0x14] sm:$0xf]
      %v298 = vld [vmem:[%s273 + $0x18] sm:$0xf]
      %v299 = vld [vmem:[%s273 + $0x1c] sm:$0xf]
      %v300 = vunpack.c.l.bf16 %v292
      %v301 = vunpack.c.l.bf16 %v293
      %v302 = vunpack.c.l.bf16 %v294
      %v303 = vunpack.c.l.bf16 %v295
      %v304 = vunpack.c.l.bf16 %v296
      %v305 = vunpack.c.l.bf16 %v297
      %v306 = vunpack.c.l.bf16 %v298
      %v307 = vunpack.c.l.bf16 %v299
      %316 = vrot.lane.b32.xlu0 %v300, 124
      %v317 = vpop.permute.xlu0 %316
      %318 = vrot.lane.b32.xlu0 %v301, 124
      %v319 = vpop.permute.xlu0 %318
      %320 = vrot.lane.b32.xlu0 %v302, 124
      %v321 = vpop.permute.xlu0 %320
      %322 = vrot.lane.b32.xlu0 %v303, 124
      %v323 = vpop.permute.xlu0 %322
      %324 = vrot.lane.b32.xlu0 %v304, 124
      %v325 = vpop.permute.xlu0 %324
      %326 = vrot.lane.b32.xlu0 %v305, 124
      %v327 = vpop.permute.xlu0 %326
      %328 = vrot.lane.b32.xlu0 %v306, 124
      %v329 = vpop.permute.xlu0 %328
      %330 = vrot.lane.b32.xlu0 %v307, 124
      %v331 = vpop.permute.xlu0 %330
      %v340 = vmax.f32 %v300, %v317
      %v341 = vmax.f32 %v301, %v319
      %v342 = vmax.f32 %v302, %v321
      %v343 = vmax.f32 %v303, %v323
      %v344 = vmax.f32 %v304, %v325
      %v345 = vmax.f32 %v305, %v327
      %v346 = vmax.f32 %v306, %v329
      %v347 = vmax.f32 %v307, %v331
      %v348 = vpack.c.bf16 %v340, %v340
      %v349 = vpack.c.bf16 %v341, %v341
      %v350 = vpack.c.bf16 %v342, %v342
      %v351 = vpack.c.bf16 %v343, %v343
      %v352 = vpack.c.bf16 %v344, %v344
      %v353 = vpack.c.bf16 %v345, %v345
      %v354 = vpack.c.bf16 %v346, %v346
      %v355 = vpack.c.bf16 %v347, %v347
      %v356 = vunpack.c.l.bf16 %v348
      %v357 = vunpack.c.l.bf16 %v349
      %v358 = vunpack.c.l.bf16 %v350
      %v359 = vunpack.c.l.bf16 %v351
      %v360 = vunpack.c.l.bf16 %v352
      %v361 = vunpack.c.l.bf16 %v353
      %v362 = vunpack.c.l.bf16 %v354
      %v363 = vunpack.c.l.bf16 %v355
      %372 = vrot.lane.b32.xlu0 %v356, 120
      %v373 = vpop.permute.xlu0 %372
      %374 = vrot.lane.b32.xlu0 %v357, 120
      %v375 = vpop.permute.xlu0 %374
      %376 = vrot.lane.b32.xlu0 %v358, 120
      %v377 = vpop.permute.xlu0 %376
      %378 = vrot.lane.b32.xlu0 %v359, 120
      %v379 = vpop.permute.xlu0 %378
      %380 = vrot.lane.b32.xlu0 %v360, 120
      %v381 = vpop.permute.xlu0 %380
      %382 = vrot.lane.b32.xlu0 %v361, 120
      %v383 = vpop.permute.xlu0 %382
      %384 = vrot.lane.b32.xlu0 %v362, 120
      %v385 = vpop.permute.xlu0 %384
      %386 = vrot.lane.b32.xlu0 %v363, 120
      %v387 = vpop.permute.xlu0 %386
      %v396 = vmax.f32 %v356, %v373
      %v397 = vmax.f32 %v357, %v375
      %v398 = vmax.f32 %v358, %v377
      %v399 = vmax.f32 %v359, %v379
      %v400 = vmax.f32 %v360, %v381
      %v401 = vmax.f32 %v361, %v383
      %v402 = vmax.f32 %v362, %v385
      %v403 = vmax.f32 %v363, %v387
      %v404 = vpack.c.bf16 %v396, %v396
      %v405 = vpack.c.bf16 %v397, %v397
      %v406 = vpack.c.bf16 %v398, %v398
      %v407 = vpack.c.bf16 %v399, %v399
      %v408 = vpack.c.bf16 %v400, %v400
      %v409 = vpack.c.bf16 %v401, %v401
      %v410 = vpack.c.bf16 %v402, %v402
      %v411 = vpack.c.bf16 %v403, %v403
      %v412 = vunpack.c.l.bf16 %v404
      %v413 = vunpack.c.l.bf16 %v405
      %v414 = vunpack.c.l.bf16 %v406
      %v415 = vunpack.c.l.bf16 %v407
      %v416 = vunpack.c.l.bf16 %v408
      %v417 = vunpack.c.l.bf16 %v409
      %v418 = vunpack.c.l.bf16 %v410
      %v419 = vunpack.c.l.bf16 %v411
      %420 = vst.msk [vmem:[#allocation2 + $0x9] sm:$0xff] %vm280, %v412
      %421 = vst.msk [vmem:[#allocation2 + $0x11] sm:$0xff] %vm280, %v413
      %422 = vst.msk [vmem:[#allocation2 + $0x19] sm:$0xff] %vm280, %v414
      %423 = vst.msk [vmem:[#allocation2 + $0x21] sm:$0xff] %vm280, %v415
      %424 = vst.msk [vmem:[#allocation2 + $0x29] sm:$0xff] %vm280, %v416
      %425 = vst.msk [vmem:[#allocation2 + $0x31] sm:$0xff] %vm280, %v417
      %426 = vst.msk [vmem:[#allocation2 + $0x39] sm:$0xff] %vm280, %v418
      %427 = vst.msk [vmem:[#allocation2 + $0x41] sm:$0xff] %vm280, %v419
      %v428 = vlaneseq
      %v429 = vshrl.u32 %v428, 7
      %v430 = vadd.s32 %v429, 8
      %v431 = vadd.s32 %v429, 16
      %v432 = vadd.s32 %v429, 24
      %v433 = vadd.s32 %v429, 32
      %v434 = vadd.s32 %v429, 40
      %v435 = vadd.s32 %v429, 48
      %v436 = vadd.s32 %v429, 56
      %vm437 = vcmp.lt.s32.totalorder %v429, 0
      %v438 = vsub.s32 0, %v429
      %v439 = vsel %vm437, %v438, %v429
      %v440 = vshrl.u32 %v439, 3
      %v441 = vand.u32 %v439, 7
      %v442 = vsub.s32 0, %v441
      %v443 = vsel %vm437, %v442, %v441
      %vm444 = vcmp.lt.s32.totalorder %v430, 0
      %v445 = vsub.s32 0, %v430
      %v446 = vsel %vm444, %v445, %v430
      %v447 = vshrl.u32 %v446, 3
      %v448 = vand.u32 %v446, 7
      %v449 = vsub.s32 0, %v448
      %v450 = vsel %vm444, %v449, %v448
      %vm451 = vcmp.lt.s32.totalorder %v431, 0
      %v452 = vsub.s32 0, %v431
      %v453 = vsel %vm451, %v452, %v431
      %v454 = vshrl.u32 %v453, 3
      %v455 = vand.u32 %v453, 7
      %v456 = vsub.s32 0, %v455
      %v457 = vsel %vm451, %v456, %v455
      %vm458 = vcmp.lt.s32.totalorder %v432, 0
      %v459 = vsub.s32 0, %v432
      %v460 = vsel %vm458, %v459, %v432
      %v461 = vshrl.u32 %v460, 3
      %v462 = vand.u32 %v460, 7
      %v463 = vsub.s32 0, %v462
      %v464 = vsel %vm458, %v463, %v462
      %vm465 = vcmp.lt.s32.totalorder %v433, 0
      %v466 = vsub.s32 0, %v433
      %v467 = vsel %vm465, %v466, %v433
      %v468 = vshrl.u32 %v467, 3
      %v469 = vand.u32 %v467, 7
      %v470 = vsub.s32 0, %v469
      %v471 = vsel %vm465, %v470, %v469
      %vm472 = vcmp.lt.s32.totalorder %v434, 0
      %v473 = vsub.s32 0, %v434
      %v474 = vsel %vm472, %v473, %v434
      %v475 = vshrl.u32 %v474, 3
      %v476 = vand.u32 %v474, 7
      %v477 = vsub.s32 0, %v476
      %v478 = vsel %vm472, %v477, %v476
      %vm479 = vcmp.lt.s32.totalorder %v435, 0
      %v480 = vsub.s32 0, %v435
      %v481 = vsel %vm479, %v480, %v435
      %v482 = vshrl.u32 %v481, 3
      %v483 = vand.u32 %v481, 7
      %v484 = vsub.s32 0, %v483
      %v485 = vsel %vm479, %v484, %v483
      %vm486 = vcmp.lt.s32.totalorder %v436, 0
      %v487 = vsub.s32 0, %v436
      %v488 = vsel %vm486, %v487, %v436
      %v489 = vshrl.u32 %v488, 3
      %v490 = vand.u32 %v488, 7
      %v491 = vsub.s32 0, %v490
      %v492 = vsel %vm486, %v491, %v490
      %vm493 = vcmp.ne.s32.totalorder %v443, 0
      %vm494 = vcmp.ne.s32.totalorder %v450, 0
      %vm495 = vcmp.ne.s32.totalorder %v457, 0
      %vm496 = vcmp.ne.s32.totalorder %v464, 0
      %vm497 = vcmp.ne.s32.totalorder %v471, 0
      %vm498 = vcmp.ne.s32.totalorder %v478, 0
      %vm499 = vcmp.ne.s32.totalorder %v485, 0
      %vm500 = vcmp.ne.s32.totalorder %v492, 0
      %vm501 = vcmp.lt.s32.totalorder %v443, 0
      %vm502 = vcmp.lt.s32.totalorder %v450, 0
      %vm503 = vcmp.lt.s32.totalorder %v457, 0
      %vm504 = vcmp.lt.s32.totalorder %v464, 0
      %vm505 = vcmp.lt.s32.totalorder %v471, 0
      %vm506 = vcmp.lt.s32.totalorder %v478, 0
      %vm507 = vcmp.lt.s32.totalorder %v485, 0
      %vm508 = vcmp.lt.s32.totalorder %v492, 0
      %vm509 = vmand %vm501, %vm493
      %vm510 = vmand %vm502, %vm494
      %vm511 = vmand %vm503, %vm495
      %vm512 = vmand %vm504, %vm496
      %vm513 = vmand %vm505, %vm497
      %vm514 = vmand %vm506, %vm498
      %vm515 = vmand %vm507, %vm499
      %vm516 = vmand %vm508, %vm500
      %v517 = vadd.s32 %v443, 8
      %v518 = vadd.s32 %v450, 8
      %v519 = vadd.s32 %v457, 8
      %v520 = vadd.s32 %v464, 8
      %v521 = vadd.s32 %v471, 8
      %v522 = vadd.s32 %v478, 8
      %v523 = vadd.s32 %v485, 8
      %v524 = vadd.s32 %v492, 8
      %v525 = vsel %vm509, %v517, %v443
      %v526 = vsel %vm510, %v518, %v450
      %v527 = vsel %vm511, %v519, %v457
      %v528 = vsel %vm512, %v520, %v464
      %v529 = vsel %vm513, %v521, %v471
      %v530 = vsel %vm514, %v522, %v478
      %v531 = vsel %vm515, %v523, %v485
      %v532 = vsel %vm516, %v524, %v492
      %vm533 = vcmp.ne.s32.totalorder %v525, 0
      %vm534 = vcmp.ne.s32.totalorder %v526, 0
      %vm535 = vcmp.ne.s32.totalorder %v527, 0
      %vm536 = vcmp.ne.s32.totalorder %v528, 0
      %vm537 = vcmp.ne.s32.totalorder %v529, 0
      %vm538 = vcmp.ne.s32.totalorder %v530, 0
      %vm539 = vcmp.ne.s32.totalorder %v531, 0
      %vm540 = vcmp.ne.s32.totalorder %v532, 0
      %vm541 = vcmp.ne.s32.totalorder %v525, 7
      %vm542 = vcmp.ne.s32.totalorder %v526, 7
      %vm543 = vcmp.ne.s32.totalorder %v527, 7
      %vm544 = vcmp.ne.s32.totalorder %v528, 7
      %vm545 = vcmp.ne.s32.totalorder %v529, 7
      %vm546 = vcmp.ne.s32.totalorder %v530, 7
      %vm547 = vcmp.ne.s32.totalorder %v531, 7
      %vm548 = vcmp.ne.s32.totalorder %v532, 7
      %v549 = vsel %vm533, 1, 0
      %v550 = vsel %vm534, 1, 0
      %v551 = vsel %vm535, 1, 0
      %v552 = vsel %vm536, 1, 0
      %v553 = vsel %vm537, 1, 0
      %v554 = vsel %vm538, 1, 0
      %v555 = vsel %vm539, 1, 0
      %v556 = vsel %vm540, 1, 0
      %vm557 = vcmp.eq.s32.totalorder %v549, 1
      %vm558 = vcmp.eq.s32.totalorder %v550, 1
      %vm559 = vcmp.eq.s32.totalorder %v551, 1
      %vm560 = vcmp.eq.s32.totalorder %v552, 1
      %vm561 = vcmp.eq.s32.totalorder %v553, 1
      %vm562 = vcmp.eq.s32.totalorder %v554, 1
      %vm563 = vcmp.eq.s32.totalorder %v555, 1
      %vm564 = vcmp.eq.s32.totalorder %v556, 1
      %v565 = vsel %vm541, 1, 0
      %v566 = vsel %vm542, 1, 0
      %v567 = vsel %vm543, 1, 0
      %v568 = vsel %vm544, 1, 0
      %v569 = vsel %vm545, 1, 0
      %v570 = vsel %vm546, 1, 0
      %v571 = vsel %vm547, 1, 0
      %v572 = vsel %vm548, 1, 0
      %vm573 = vcmp.eq.s32.totalorder %v565, 1
      %vm574 = vcmp.eq.s32.totalorder %v566, 1
      %vm575 = vcmp.eq.s32.totalorder %v567, 1
      %vm576 = vcmp.eq.s32.totalorder %v568, 1
      %vm577 = vcmp.eq.s32.totalorder %v569, 1
      %vm578 = vcmp.eq.s32.totalorder %v570, 1
      %vm579 = vcmp.eq.s32.totalorder %v571, 1
      %vm580 = vcmp.eq.s32.totalorder %v572, 1
      %v581 = vld [vmem:[#allocation2] sm:$0xff]
      %v582 = vld [vmem:[#allocation2 + $0x8] sm:$0xff]
      %v583 = vld [vmem:[#allocation2 + $0x10] sm:$0xff]
      %v584 = vld [vmem:[#allocation2 + $0x18] sm:$0xff]
      %v585 = vld [vmem:[#allocation2 + $0x20] sm:$0xff]
      %v586 = vld [vmem:[#allocation2 + $0x28] sm:$0xff]
      %v587 = vld [vmem:[#allocation2 + $0x30] sm:$0xff]
      %v588 = vld [vmem:[#allocation2 + $0x38] sm:$0xff]
      %v589 = vsel %vm557, %v581, 0.0
      %v590 = vsel %vm558, %v582, 0.0
      %v591 = vsel %vm559, %v583, 0.0
      %v592 = vsel %vm560, %v584, 0.0
      %v593 = vsel %vm561, %v585, 0.0
      %v594 = vsel %vm562, %v586, 0.0
      %v595 = vsel %vm563, %v587, 0.0
      %v596 = vsel %vm564, %v588, 0.0
      %v597 = vpack.c.bf16 %v589, %v589
      %v598 = vpack.c.bf16 %v590, %v590
      %v599 = vpack.c.bf16 %v591, %v591
      %v600 = vpack.c.bf16 %v592, %v592
      %v601 = vpack.c.bf16 %v593, %v593
      %v602 = vpack.c.bf16 %v594, %v594
      %v603 = vpack.c.bf16 %v595, %v595
      %v604 = vpack.c.bf16 %v596, %v596
      %v605 = vld [vmem:[#allocation2 + $0x1] sm:$0xff]
      %v606 = vld [vmem:[#allocation2 + $0x9] sm:$0xff]
      %v607 = vld [vmem:[#allocation2 + $0x11] sm:$0xff]
      %v608 = vld [vmem:[#allocation2 + $0x19] sm:$0xff]
      %v609 = vld [vmem:[#allocation2 + $0x21] sm:$0xff]
      %v610 = vld [vmem:[#allocation2 + $0x29] sm:$0xff]
      %v611 = vld [vmem:[#allocation2 + $0x31] sm:$0xff]
      %v612 = vld [vmem:[#allocation2 + $0x39] sm:$0xff]
      %v613 = vpack.c.bf16 %v605, %v605
      %v614 = vpack.c.bf16 %v606, %v606
      %v615 = vpack.c.bf16 %v607, %v607
      %v616 = vpack.c.bf16 %v608, %v608
      %v617 = vpack.c.bf16 %v609, %v609
      %v618 = vpack.c.bf16 %v610, %v610
      %v619 = vpack.c.bf16 %v611, %v611
      %v620 = vpack.c.bf16 %v612, %v612
      %v621 = vld [vmem:[#allocation2 + $0x2] sm:$0xff]
      %v622 = vld [vmem:[#allocation2 + $0xa] sm:$0xff]
      %v623 = vld [vmem:[#allocation2 + $0x12] sm:$0xff]
      %v624 = vld [vmem:[#allocation2 + $0x1a] sm:$0xff]
      %v625 = vld [vmem:[#allocation2 + $0x22] sm:$0xff]
      %v626 = vld [vmem:[#allocation2 + $0x2a] sm:$0xff]
      %v627 = vld [vmem:[#allocation2 + $0x32] sm:$0xff]
      %v628 = vld [vmem:[#allocation2 + $0x3a] sm:$0xff]
      %v629 = vsel %vm573, %v621, 0.0
      %v630 = vsel %vm574, %v622, 0.0
      %v631 = vsel %vm575, %v623, 0.0
      %v632 = vsel %vm576, %v624, 0.0
      %v633 = vsel %vm577, %v625, 0.0
      %v634 = vsel %vm578, %v626, 0.0
      %v635 = vsel %vm579, %v627, 0.0
      %v636 = vsel %vm580, %v628, 0.0
      %v637 = vpack.c.bf16 %v629, %v629
      %v638 = vpack.c.bf16 %v630, %v630
      %v639 = vpack.c.bf16 %v631, %v631
      %v640 = vpack.c.bf16 %v632, %v632
      %v641 = vpack.c.bf16 %v633, %v633
      %v642 = vpack.c.bf16 %v634, %v634
      %v643 = vpack.c.bf16 %v635, %v635
      %v644 = vpack.c.bf16 %v636, %v636
      %v653 = vunpack.c.l.b16 %v597
      %v654 = vunpack.c.l.b16 %v598
      %v655 = vunpack.c.l.b16 %v599
      %v656 = vunpack.c.l.b16 %v600
      %v657 = vunpack.c.l.b16 %v601
      %v658 = vunpack.c.l.b16 %v602
      %v659 = vunpack.c.l.b16 %v603
      %v660 = vunpack.c.l.b16 %v604
      %v661 = vpack.c.b16 %v654, %v653
      %v662 = vpack.c.b16 %v656, %v655
      %v663 = vpack.c.b16 %v658, %v657
      %v664 = vpack.c.b16 %v660, %v659
      %v673 = vunpack.c.l.b16 %v613
      %v674 = vunpack.c.l.b16 %v614
      %v675 = vunpack.c.l.b16 %v615
      %v676 = vunpack.c.l.b16 %v616
      %v677 = vunpack.c.l.b16 %v617
      %v678 = vunpack.c.l.b16 %v618
      %v679 = vunpack.c.l.b16 %v619
      %v680 = vunpack.c.l.b16 %v620
      %v681 = vpack.c.b16 %v674, %v673
      %v682 = vpack.c.b16 %v676, %v675
      %v683 = vpack.c.b16 %v678, %v677
      %v684 = vpack.c.b16 %v680, %v679
      %685 = vrot.lane.b32.xlu0 %v681, 4
      %v686 = vpop.permute.xlu0 %685
      %687 = vrot.lane.b32.xlu0 %v682, 4
      %v688 = vpop.permute.xlu0 %687
      %689 = vrot.lane.b32.xlu0 %v683, 4
      %v690 = vpop.permute.xlu0 %689
      %691 = vrot.lane.b32.xlu0 %v684, 4
      %v692 = vpop.permute.xlu0 %691
      %v701 = vunpack.c.l.b16 %v637
      %v702 = vunpack.c.l.b16 %v638
      %v703 = vunpack.c.l.b16 %v639
      %v704 = vunpack.c.l.b16 %v640
      %v705 = vunpack.c.l.b16 %v641
      %v706 = vunpack.c.l.b16 %v642
      %v707 = vunpack.c.l.b16 %v643
      %v708 = vunpack.c.l.b16 %v644
      %v709 = vpack.c.b16 %v702, %v701
      %v710 = vpack.c.b16 %v704, %v703
      %v711 = vpack.c.b16 %v706, %v705
      %v712 = vpack.c.b16 %v708, %v707
      %713 = vrot.lane.b32.xlu0 %v709, 8
      %v714 = vpop.permute.xlu0 %713
      %715 = vrot.lane.b32.xlu0 %v710, 8
      %v716 = vpop.permute.xlu0 %715
      %717 = vrot.lane.b32.xlu0 %v711, 8
      %v718 = vpop.permute.xlu0 %717
      %719 = vrot.lane.b32.xlu0 %v712, 8
      %v720 = vpop.permute.xlu0 %719
      %v723 = vsel %vm280, %v661, %v686
      %v726 = vsel %vm280, %v662, %v688
      %v729 = vsel %vm280, %v663, %v690
      %v732 = vsel %vm280, %v664, %v692
      %v734 = vsel %vm286, %v723, %v714
      %v736 = vsel %vm286, %v726, %v716
      %v738 = vsel %vm286, %v729, %v718
      %v740 = vsel %vm286, %v732, %v720
      %v741 = vld [vmem:[%s1] sm:$0xf]
      %v742 = vld [vmem:[%s1 + $0x4] sm:$0x3]
      %v743 = vld [vmem:[#allocation2 + $0x40] sm:$0xff]
      %v744 = vsel %vm557, %v582, 0.0
      %v745 = vsel %vm558, %v583, 0.0
      %v746 = vsel %vm559, %v584, 0.0
      %v747 = vsel %vm560, %v585, 0.0
      %v748 = vsel %vm561, %v586, 0.0
      %v749 = vsel %vm562, %v587, 0.0
      %v750 = vsel %vm563, %v588, 0.0
      %v751 = vsel %vm564, %v743, 0.0
      %v752 = vpack.c.bf16 %v744, %v744
      %v753 = vpack.c.bf16 %v745, %v745
      %v754 = vpack.c.bf16 %v746, %v746
      %v755 = vpack.c.bf16 %v747, %v747
      %v756 = vpack.c.bf16 %v748, %v748
      %v757 = vpack.c.bf16 %v749, %v749
      %v758 = vpack.c.bf16 %v750, %v750
      %v759 = vpack.c.bf16 %v751, %v751
      %v760 = vld [vmem:[#allocation2 + $0x41] sm:$0xff]
      %v761 = vpack.c.bf16 %v760, %v760
      %v762 = vld [vmem:[#allocation2 + $0x42] sm:$0xff]
      %v763 = vsel %vm573, %v622, 0.0
      %v764 = vsel %vm574, %v623, 0.0
      %v765 = vsel %vm575, %v624, 0.0
      %v766 = vsel %vm576, %v625, 0.0
      %v767 = vsel %vm577, %v626, 0.0
      %v768 = vsel %vm578, %v627, 0.0
      %v769 = vsel %vm579, %v628, 0.0
      %v770 = vsel %vm580, %v762, 0.0
      %v771 = vpack.c.bf16 %v763, %v763
      %v772 = vpack.c.bf16 %v764, %v764
      %v773 = vpack.c.bf16 %v765, %v765
      %v774 = vpack.c.bf16 %v766, %v766
      %v775 = vpack.c.bf16 %v767, %v767
      %v776 = vpack.c.bf16 %v768, %v768
      %v777 = vpack.c.bf16 %v769, %v769
      %v778 = vpack.c.bf16 %v770, %v770
      %v787 = vunpack.c.l.b16 %v752
      %v788 = vunpack.c.l.b16 %v753
      %v789 = vunpack.c.l.b16 %v754
      %v790 = vunpack.c.l.b16 %v755
      %v791 = vunpack.c.l.b16 %v756
      %v792 = vunpack.c.l.b16 %v757
      %v793 = vunpack.c.l.b16 %v758
      %v794 = vunpack.c.l.b16 %v759
      %v795 = vpack.c.b16 %v788, %v787
      %v796 = vpack.c.b16 %v790, %v789
      %v797 = vpack.c.b16 %v792, %v791
      %v798 = vpack.c.b16 %v794, %v793
      %v800 = vunpack.c.l.b16 %v761
      %v801 = vpack.c.b16 %v675, %v674
      %v802 = vpack.c.b16 %v677, %v676
      %v803 = vpack.c.b16 %v679, %v678
      %v804 = vpack.c.b16 %v800, %v680
      %805 = vrot.lane.b32.xlu0 %v801, 4
      %v806 = vpop.permute.xlu0 %805
      %807 = vrot.lane.b32.xlu0 %v802, 4
      %v808 = vpop.permute.xlu0 %807
      %809 = vrot.lane.b32.xlu0 %v803, 4
      %v810 = vpop.permute.xlu0 %809
      %811 = vrot.lane.b32.xlu0 %v804, 4
      %v812 = vpop.permute.xlu0 %811
      %v821 = vunpack.c.l.b16 %v771
      %v822 = vunpack.c.l.b16 %v772
      %v823 = vunpack.c.l.b16 %v773
      %v824 = vunpack.c.l.b16 %v774
      %v825 = vunpack.c.l.b16 %v775
      %v826 = vunpack.c.l.b16 %v776
      %v827 = vunpack.c.l.b16 %v777
      %v828 = vunpack.c.l.b16 %v778
      %v829 = vpack.c.b16 %v822, %v821
      %v830 = vpack.c.b16 %v824, %v823
      %v831 = vpack.c.b16 %v826, %v825
      %v832 = vpack.c.b16 %v828, %v827
      %833 = vrot.lane.b32.xlu0 %v829, 8
      %v834 = vpop.permute.xlu0 %833
      %835 = vrot.lane.b32.xlu0 %v830, 8
      %v836 = vpop.permute.xlu0 %835
      %837 = vrot.lane.b32.xlu0 %v831, 8
      %v838 = vpop.permute.xlu0 %837
      %839 = vrot.lane.b32.xlu0 %v832, 8
      %v840 = vpop.permute.xlu0 %839
      %v843 = vsel %vm280, %v795, %v806
      %v846 = vsel %vm280, %v796, %v808
      %v849 = vsel %vm280, %v797, %v810
      %v852 = vsel %vm280, %v798, %v812
      %v854 = vsel %vm286, %v843, %v834
      %v856 = vsel %vm286, %v846, %v836
      %v858 = vsel %vm286, %v849, %v838
      %v860 = vsel %vm286, %v852, %v840
      %s861 = scalar_lea.vmem %s1, 8
      %v862 = vld [vmem:[%s861] sm:$0xf]
      %v863 = vld [vmem:[%s861 + $0x4] sm:$0x3]
      %v866 = vunpack.c.l.b16 %v862
      %v867 = vunpack.c.l.b16 %v863
      %v868 = vpack.c.b16 %v867, %v866
      %vm869 = vcmask 97280
      %v870 = vsel %vm869, %v854, 0
      %v872 = vsel %vm869, %v856, 0
      %v874 = vsel %vm869, %v858, 0
      %v876 = vsel %vm869, %v860, 0
      %vm878 = vcmask 1045504
      %v880 = vsel %vm878, %v868, 0
      %882 = vmatpush.bf16.msra.mxu0 0
      %883 = vmatpush.bf16.msra.mxu0 0
      %884 = vmatpush.bf16.msra.mxu0 0
      %885 = vmatpush.bf16.msra.mxu0 0
      %886 = vmatpush.bf16.msra.mxu0 0
      %887 = vmatpush.bf16.msra.mxu0 0
      %888 = vmatpush.bf16.msra.mxu0 0
      %889 = vmatpush.bf16.msra.mxu0 %v880
      %890 = vmatmul.bf16.gmra.mxu0 %v870
      %v891 = vpop.f32.mrf.mxu0
      %v892 = vadd.f32 0.0, %v891
      %v893 = vpop.f32.mrf.mxu0
      %v894 = vadd.f32 0.0, %v893
      %895 = vmatmul.bf16.gmra.mxu0 %v872
      %v896 = vpop.f32.mrf.mxu0
      %v897 = vadd.f32 0.0, %v896
      %v898 = vpop.f32.mrf.mxu0
      %v899 = vadd.f32 0.0, %v898
      %900 = vmatmul.bf16.gmra.mxu0 %v874
      %v901 = vpop.f32.mrf.mxu0
      %v902 = vadd.f32 0.0, %v901
      %v903 = vpop.f32.mrf.mxu0
      %v904 = vadd.f32 0.0, %v903
      %905 = vmatmul.bf16.gmra.mxu0 %v876
      %v906 = vpop.f32.mrf.mxu0
      %v907 = vadd.f32 0.0, %v906
      %v908 = vpop.f32.mrf.mxu0
      %v909 = vadd.f32 0.0, %v908
      %910 = vdwg.mxu0
      %v913 = vunpack.c.l.b16 %v741
      %v914 = vunpack.c.l.b16 %v742
      %v915 = vpack.c.b16 %v914, %v913
      %v916 = vsel %vm869, %v734, 0
      %v918 = vsel %vm869, %v736, 0
      %v920 = vsel %vm869, %v738, 0
      %v922 = vsel %vm869, %v740, 0
      %v925 = vsel %vm878, %v915, 0
      %927 = vmatpush.bf16.msra.mxu0 0
      %928 = vmatpush.bf16.msra.mxu0 0
      %929 = vmatpush.bf16.msra.mxu0 0
      %930 = vmatpush.bf16.msra.mxu0 0
      %931 = vmatpush.bf16.msra.mxu0 0
      %932 = vmatpush.bf16.msra.mxu0 0
      %933 = vmatpush.bf16.msra.mxu0 0
      %934 = vmatpush.bf16.msra.mxu0 %v925
      %935 = vmatmul.bf16.gmra.mxu0 %v916
      %v936 = vpop.f32.mrf.mxu0
      %v937 = vadd.f32 %v892, %v936
      %v938 = vpop.f32.mrf.mxu0
      %v939 = vadd.f32 %v894, %v938
      %940 = vmatmul.bf16.gmra.mxu0 %v918
      %v941 = vpop.f32.mrf.mxu0
      %v942 = vadd.f32 %v897, %v941
      %v943 = vpop.f32.mrf.mxu0
      %v944 = vadd.f32 %v899, %v943
      %945 = vmatmul.bf16.gmra.mxu0 %v920
      %v946 = vpop.f32.mrf.mxu0
      %v947 = vadd.f32 %v902, %v946
      %v948 = vpop.f32.mrf.mxu0
      %v949 = vadd.f32 %v904, %v948
      %950 = vmatmul.bf16.gmra.mxu0 %v922
      %v951 = vpop.f32.mrf.mxu0
      %v952 = vadd.f32 %v907, %v951
      %v953 = vpop.f32.mrf.mxu0
      %v954 = vadd.f32 %v909, %v953
      %955 = vdwg.mxu0
      %v956 = vld [vmem:[#allocation2 + $0x10] sm:$0xff]
      %v957 = vld [vmem:[#allocation2 + $0x18] sm:$0xff]
      %v958 = vld [vmem:[#allocation2 + $0x20] sm:$0xff]
      %v959 = vld [vmem:[#allocation2 + $0x28] sm:$0xff]
      %v960 = vld [vmem:[#allocation2 + $0x30] sm:$0xff]
      %v961 = vld [vmem:[#allocation2 + $0x38] sm:$0xff]
      %v962 = vld [vmem:[#allocation2 + $0x40] sm:$0xff]
      %v963 = vld [vmem:[#allocation2 + $0x48] sm:$0xff]
      %v964 = vsel %vm557, %v956, 0.0
      %v965 = vsel %vm558, %v957, 0.0
      %v966 = vsel %vm559, %v958, 0.0
      %v967 = vsel %vm560, %v959, 0.0
      %v968 = vsel %vm561, %v960, 0.0
      %v969 = vsel %vm562, %v961, 0.0
      %v970 = vsel %vm563, %v962, 0.0
      %v971 = vsel %vm564, %v963, 0.0
      %v972 = vpack.c.bf16 %v964, %v964
      %v973 = vpack.c.bf16 %v965, %v965
      %v974 = vpack.c.bf16 %v966, %v966
      %v975 = vpack.c.bf16 %v967, %v967
      %v976 = vpack.c.bf16 %v968, %v968
      %v977 = vpack.c.bf16 %v969, %v969
      %v978 = vpack.c.bf16 %v970, %v970
      %v979 = vpack.c.bf16 %v971, %v971
      %v980 = vld [vmem:[#allocation2 + $0x11] sm:$0xff]
      %v981 = vld [vmem:[#allocation2 + $0x19] sm:$0xff]
      %v982 = vld [vmem:[#allocation2 + $0x21] sm:$0xff]
      %v983 = vld [vmem:[#allocation2 + $0x29] sm:$0xff]
      %v984 = vld [vmem:[#allocation2 + $0x31] sm:$0xff]
      %v985 = vld [vmem:[#allocation2 + $0x39] sm:$0xff]
      %v986 = vld [vmem:[#allocation2 + $0x41] sm:$0xff]
      %v987 = vld [vmem:[#allocation2 + $0x49] sm:$0xff]
      %v988 = vpack.c.bf16 %v980, %v980
      %v989 = vpack.c.bf16 %v981, %v981
      %v990 = vpack.c.bf16 %v982, %v982
      %v991 = vpack.c.bf16 %v983, %v983
      %v992 = vpack.c.bf16 %v984, %v984
      %v993 = vpack.c.bf16 %v985, %v985
      %v994 = vpack.c.bf16 %v986, %v986
      %v995 = vpack.c.bf16 %v987, %v987
      %v996 = vld [vmem:[#allocation2 + $0x12] sm:$0xff]
      %v997 = vld [vmem:[#allocation2 + $0x1a] sm:$0xff]
      %v998 = vld [vmem:[#allocation2 + $0x22] sm:$0xff]
      %v999 = vld [vmem:[#allocation2 + $0x2a] sm:$0xff]
      %v1000 = vld [vmem:[#allocation2 + $0x32] sm:$0xff]
      %v1001 = vld [vmem:[#allocation2 + $0x3a] sm:$0xff]
      %v1002 = vld [vmem:[#allocation2 + $0x42] sm:$0xff]
      %v1003 = vld [vmem:[#allocation2 + $0x4a] sm:$0xff]
      %v1004 = vsel %vm573, %v996, 0.0
      %v1005 = vsel %vm574, %v997, 0.0
      %v1006 = vsel %vm575, %v998, 0.0
      %v1007 = vsel %vm576, %v999, 0.0
      %v1008 = vsel %vm577, %v1000, 0.0
      %v1009 = vsel %vm578, %v1001, 0.0
      %v1010 = vsel %vm579, %v1002, 0.0
      %v1011 = vsel %vm580, %v1003, 0.0
      %v1012 = vpack.c.bf16 %v1004, %v1004
      %v1013 = vpack.c.bf16 %v1005, %v1005
      %v1014 = vpack.c.bf16 %v1006, %v1006
      %v1015 = vpack.c.bf16 %v1007, %v1007
      %v1016 = vpack.c.bf16 %v1008, %v1008
      %v1017 = vpack.c.bf16 %v1009, %v1009
      %v1018 = vpack.c.bf16 %v1010, %v1010
      %v1019 = vpack.c.bf16 %v1011, %v1011
      %v1028 = vunpack.c.l.b16 %v972
      %v1029 = vunpack.c.l.b16 %v973
      %v1030 = vunpack.c.l.b16 %v974
      %v1031 = vunpack.c.l.b16 %v975
      %v1032 = vunpack.c.l.b16 %v976
      %v1033 = vunpack.c.l.b16 %v977
      %v1034 = vunpack.c.l.b16 %v978
      %v1035 = vunpack.c.l.b16 %v979
      %v1036 = vpack.c.b16 %v1029, %v1028
      %v1037 = vpack.c.b16 %v1031, %v1030
      %v1038 = vpack.c.b16 %v1033, %v1032
      %v1039 = vpack.c.b16 %v1035, %v1034
      %v1048 = vunpack.c.l.b16 %v988
      %v1049 = vunpack.c.l.b16 %v989
      %v1050 = vunpack.c.l.b16 %v990
      %v1051 = vunpack.c.l.b16 %v991
      %v1052 = vunpack.c.l.b16 %v992
      %v1053 = vunpack.c.l.b16 %v993
      %v1054 = vunpack.c.l.b16 %v994
      %v1055 = vunpack.c.l.b16 %v995
      %v1056 = vpack.c.b16 %v1049, %v1048
      %v1057 = vpack.c.b16 %v1051, %v1050
      %v1058 = vpack.c.b16 %v1053, %v1052
      %v1059 = vpack.c.b16 %v1055, %v1054
      %1060 = vrot.lane.b32.xlu0 %v1056, 4
      %v1061 = vpop.permute.xlu0 %1060
      %1062 = vrot.lane.b32.xlu0 %v1057, 4
      %v1063 = vpop.permute.xlu0 %1062
      %1064 = vrot.lane.b32.xlu0 %v1058, 4
      %v1065 = vpop.permute.xlu0 %1064
      %1066 = vrot.lane.b32.xlu0 %v1059, 4
      %v1067 = vpop.permute.xlu0 %1066
      %v1076 = vunpack.c.l.b16 %v1012
      %v1077 = vunpack.c.l.b16 %v1013
      %v1078 = vunpack.c.l.b16 %v1014
      %v1079 = vunpack.c.l.b16 %v1015
      %v1080 = vunpack.c.l.b16 %v1016
      %v1081 = vunpack.c.l.b16 %v1017
      %v1082 = vunpack.c.l.b16 %v1018
      %v1083 = vunpack.c.l.b16 %v1019
      %v1084 = vpack.c.b16 %v1077, %v1076
      %v1085 = vpack.c.b16 %v1079, %v1078
      %v1086 = vpack.c.b16 %v1081, %v1080
      %v1087 = vpack.c.b16 %v1083, %v1082
      %1088 = vrot.lane.b32.xlu0 %v1084, 8
      %v1089 = vpop.permute.xlu0 %1088
      %1090 = vrot.lane.b32.xlu0 %v1085, 8
      %v1091 = vpop.permute.xlu0 %1090
      %1092 = vrot.lane.b32.xlu0 %v1086, 8
      %v1093 = vpop.permute.xlu0 %1092
      %1094 = vrot.lane.b32.xlu0 %v1087, 8
      %v1095 = vpop.permute.xlu0 %1094
      %v1098 = vsel %vm280, %v1036, %v1061
      %v1101 = vsel %vm280, %v1037, %v1063
      %v1104 = vsel %vm280, %v1038, %v1065
      %v1107 = vsel %vm280, %v1039, %v1067
      %v1109 = vsel %vm286, %v1098, %v1089
      %v1111 = vsel %vm286, %v1101, %v1091
      %v1113 = vsel %vm286, %v1104, %v1093
      %v1115 = vsel %vm286, %v1107, %v1095
      %s1116 = scalar_lea.vmem %s1, 16
      %v1117 = vld [vmem:[%s1116] sm:$0xf]
      %v1118 = vld [vmem:[%s1116 + $0x4] sm:$0x3]
      %v1121 = vunpack.c.l.b16 %v1117
      %v1122 = vunpack.c.l.b16 %v1118
      %v1123 = vpack.c.b16 %v1122, %v1121
      %v1124 = vsel %vm869, %v1109, 0
      %v1126 = vsel %vm869, %v1111, 0
      %v1128 = vsel %vm869, %v1113, 0
      %v1130 = vsel %vm869, %v1115, 0
      %v1133 = vsel %vm878, %v1123, 0
      %1135 = vmatpush.bf16.msra.mxu0 0
      %1136 = vmatpush.bf16.msra.mxu0 0
      %1137 = vmatpush.bf16.msra.mxu0 0
      %1138 = vmatpush.bf16.msra.mxu0 0
      %1139 = vmatpush.bf16.msra.mxu0 0
      %1140 = vmatpush.bf16.msra.mxu0 0
      %1141 = vmatpush.bf16.msra.mxu0 0
      %1142 = vmatpush.bf16.msra.mxu0 %v1133
      %1143 = vmatmul.bf16.gmra.mxu0 %v1124
      %v1144 = vpop.f32.mrf.mxu0
      %v1145 = vadd.f32 0.0, %v1144
      %v1146 = vpop.f32.mrf.mxu0
      %v1147 = vadd.f32 0.0, %v1146
      %1148 = vmatmul.bf16.gmra.mxu0 %v1126
      %v1149 = vpop.f32.mrf.mxu0
      %v1150 = vadd.f32 0.0, %v1149
      %v1151 = vpop.f32.mrf.mxu0
      %v1152 = vadd.f32 0.0, %v1151
      %1153 = vmatmul.bf16.gmra.mxu0 %v1128
      %v1154 = vpop.f32.mrf.mxu0
      %v1155 = vadd.f32 0.0, %v1154
      %v1156 = vpop.f32.mrf.mxu0
      %v1157 = vadd.f32 0.0, %v1156
      %1158 = vmatmul.bf16.gmra.mxu0 %v1130
      %v1159 = vpop.f32.mrf.mxu0
      %v1160 = vadd.f32 0.0, %v1159
      %v1161 = vpop.f32.mrf.mxu0
      %v1162 = vadd.f32 0.0, %v1161
      %1163 = vdwg.mxu0
      %v1164 = vadd.f32 %v937, %v1145
      %v1165 = vadd.f32 %v939, %v1147
      %v1166 = vadd.f32 %v942, %v1150
      %v1167 = vadd.f32 %v944, %v1152
      %v1168 = vadd.f32 %v947, %v1155
      %v1169 = vadd.f32 %v949, %v1157
      %v1170 = vadd.f32 %v952, %v1160
      %v1171 = vadd.f32 %v954, %v1162
      %v1172 = vld [vmem:[%s3] sm:$0x1]
      %v1174 = vperm.slane %v1172, 0
      %v1176 = vmul.f32 %v1164, %v1174
      %v1177 = vmul.f32 %v1165, %v1174
      %v1178 = vmul.f32 %v1166, %v1174
      %v1179 = vmul.f32 %v1167, %v1174
      %v1180 = vmul.f32 %v1168, %v1174
      %v1181 = vmul.f32 %v1169, %v1174
      %v1182 = vmul.f32 %v1170, %v1174
      %v1183 = vmul.f32 %v1171, %v1174
      %v1184 = vld [vmem:[%s4] sm:$0x1]
      %v1186 = vperm.slane %v1184, 0
      %v1188 = vadd.f32 %v1176, %v1186
      %v1189 = vadd.f32 %v1177, %v1186
      %v1190 = vadd.f32 %v1178, %v1186
      %v1191 = vadd.f32 %v1179, %v1186
      %v1192 = vadd.f32 %v1180, %v1186
      %v1193 = vadd.f32 %v1181, %v1186
      %v1194 = vadd.f32 %v1182, %v1186
      %v1195 = vadd.f32 %v1183, %v1186
      %v1196 = vmax.f32 %v1188, 0.0
      %v1197 = vmax.f32 %v1189, 0.0
      %v1198 = vmax.f32 %v1190, 0.0
      %v1199 = vmax.f32 %v1191, 0.0
      %v1200 = vmax.f32 %v1192, 0.0
      %v1201 = vmax.f32 %v1193, 0.0
      %v1202 = vmax.f32 %v1194, 0.0
      %v1203 = vmax.f32 %v1195, 0.0
      %1204 = vst.msk [vmem:[#allocation3 + $0x9] sm:$0xff] %vm286, %v1196
      %1205 = vst.msk [vmem:[#allocation3 + $0x11] sm:$0xff] %vm286, %v1197
      %1206 = vst.msk [vmem:[#allocation3 + $0x19] sm:$0xff] %vm286, %v1198
      %1207 = vst.msk [vmem:[#allocation3 + $0x21] sm:$0xff] %vm286, %v1199
      %1208 = vst.msk [vmem:[#allocation3 + $0x29] sm:$0xff] %vm286, %v1200
      %1209 = vst.msk [vmem:[#allocation3 + $0x31] sm:$0xff] %vm286, %v1201
      %1210 = vst.msk [vmem:[#allocation3 + $0x39] sm:$0xff] %vm286, %v1202
      %1211 = vst.msk [vmem:[#allocation3 + $0x41] sm:$0xff] %vm286, %v1203
      %v1212 = vld [vmem:[#allocation3] sm:$0xff]
      %v1213 = vld [vmem:[#allocation3 + $0x8] sm:$0xff]
      %v1214 = vld [vmem:[#allocation3 + $0x10] sm:$0xff]
      %v1215 = vld [vmem:[#allocation3 + $0x18] sm:$0xff]
      %v1216 = vld [vmem:[#allocation3 + $0x20] sm:$0xff]
      %v1217 = vld [vmem:[#allocation3 + $0x28] sm:$0xff]
      %v1218 = vld [vmem:[#allocation3 + $0x30] sm:$0xff]
      %v1219 = vld [vmem:[#allocation3 + $0x38] sm:$0xff]
      %v1220 = vsel %vm557, %v1212, 0.0
      %v1221 = vsel %vm558, %v1213, 0.0
      %v1222 = vsel %vm559, %v1214, 0.0
      %v1223 = vsel %vm560, %v1215, 0.0
      %v1224 = vsel %vm561, %v1216, 0.0
      %v1225 = vsel %vm562, %v1217, 0.0
      %v1226 = vsel %vm563, %v1218, 0.0
      %v1227 = vsel %vm564, %v1219, 0.0
      %v1228 = vpack.c.bf16 %v1220, %v1220
      %v1229 = vpack.c.bf16 %v1221, %v1221
      %v1230 = vpack.c.bf16 %v1222, %v1222
      %v1231 = vpack.c.bf16 %v1223, %v1223
      %v1232 = vpack.c.bf16 %v1224, %v1224
      %v1233 = vpack.c.bf16 %v1225, %v1225
      %v1234 = vpack.c.bf16 %v1226, %v1226
      %v1235 = vpack.c.bf16 %v1227, %v1227
      %v1236 = vld [vmem:[#allocation3 + $0x1] sm:$0xff]
      %v1237 = vld [vmem:[#allocation3 + $0x9] sm:$0xff]
      %v1238 = vld [vmem:[#allocation3 + $0x11] sm:$0xff]
      %v1239 = vld [vmem:[#allocation3 + $0x19] sm:$0xff]
      %v1240 = vld [vmem:[#allocation3 + $0x21] sm:$0xff]
      %v1241 = vld [vmem:[#allocation3 + $0x29] sm:$0xff]
      %v1242 = vld [vmem:[#allocation3 + $0x31] sm:$0xff]
      %v1243 = vld [vmem:[#allocation3 + $0x39] sm:$0xff]
      %v1244 = vpack.c.bf16 %v1236, %v1236
      %v1245 = vpack.c.bf16 %v1237, %v1237
      %v1246 = vpack.c.bf16 %v1238, %v1238
      %v1247 = vpack.c.bf16 %v1239, %v1239
      %v1248 = vpack.c.bf16 %v1240, %v1240
      %v1249 = vpack.c.bf16 %v1241, %v1241
      %v1250 = vpack.c.bf16 %v1242, %v1242
      %v1251 = vpack.c.bf16 %v1243, %v1243
      %v1252 = vld [vmem:[#allocation3 + $0x2] sm:$0xff]
      %v1253 = vld [vmem:[#allocation3 + $0xa] sm:$0xff]
      %v1254 = vld [vmem:[#allocation3 + $0x12] sm:$0xff]
      %v1255 = vld [vmem:[#allocation3 + $0x1a] sm:$0xff]
      %v1256 = vld [vmem:[#allocation3 + $0x22] sm:$0xff]
      %v1257 = vld [vmem:[#allocation3 + $0x2a] sm:$0xff]
      %v1258 = vld [vmem:[#allocation3 + $0x32] sm:$0xff]
      %v1259 = vld [vmem:[#allocation3 + $0x3a] sm:$0xff]
      %v1260 = vsel %vm573, %v1252, 0.0
      %v1261 = vsel %vm574, %v1253, 0.0
      %v1262 = vsel %vm575, %v1254, 0.0
      %v1263 = vsel %vm576, %v1255, 0.0
      %v1264 = vsel %vm577, %v1256, 0.0
      %v1265 = vsel %vm578, %v1257, 0.0
      %v1266 = vsel %vm579, %v1258, 0.0
      %v1267 = vsel %vm580, %v1259, 0.0
      %v1268 = vpack.c.bf16 %v1260, %v1260
      %v1269 = vpack.c.bf16 %v1261, %v1261
      %v1270 = vpack.c.bf16 %v1262, %v1262
      %v1271 = vpack.c.bf16 %v1263, %v1263
      %v1272 = vpack.c.bf16 %v1264, %v1264
      %v1273 = vpack.c.bf16 %v1265, %v1265
      %v1274 = vpack.c.bf16 %v1266, %v1266
      %v1275 = vpack.c.bf16 %v1267, %v1267
      %v1284 = vunpack.c.l.b16 %v1228
      %v1285 = vunpack.c.l.b16 %v1229
      %v1286 = vunpack.c.l.b16 %v1230
      %v1287 = vunpack.c.l.b16 %v1231
      %v1288 = vunpack.c.l.b16 %v1232
      %v1289 = vunpack.c.l.b16 %v1233
      %v1290 = vunpack.c.l.b16 %v1234
      %v1291 = vunpack.c.l.b16 %v1235
      %v1292 = vpack.c.b16 %v1285, %v1284
      %v1293 = vpack.c.b16 %v1287, %v1286
      %v1294 = vpack.c.b16 %v1289, %v1288
      %v1295 = vpack.c.b16 %v1291, %v1290
      %v1304 = vunpack.c.l.b16 %v1244
      %v1305 = vunpack.c.l.b16 %v1245
      %v1306 = vunpack.c.l.b16 %v1246
      %v1307 = vunpack.c.l.b16 %v1247
      %v1308 = vunpack.c.l.b16 %v1248
      %v1309 = vunpack.c.l.b16 %v1249
      %v1310 = vunpack.c.l.b16 %v1250
      %v1311 = vunpack.c.l.b16 %v1251
      %v1312 = vpack.c.b16 %v1305, %v1304
      %v1313 = vpack.c.b16 %v1307, %v1306
      %v1314 = vpack.c.b16 %v1309, %v1308
      %v1315 = vpack.c.b16 %v1311, %v1310
      %1316 = vrot.lane.b32.xlu0 %v1312, 8
      %v1317 = vpop.permute.xlu0 %1316
      %1318 = vrot.lane.b32.xlu0 %v1313, 8
      %v1319 = vpop.permute.xlu0 %1318
      %1320 = vrot.lane.b32.xlu0 %v1314, 8
      %v1321 = vpop.permute.xlu0 %1320
      %1322 = vrot.lane.b32.xlu0 %v1315, 8
      %v1323 = vpop.permute.xlu0 %1322
      %v1332 = vunpack.c.l.b16 %v1268
      %v1333 = vunpack.c.l.b16 %v1269
      %v1334 = vunpack.c.l.b16 %v1270
      %v1335 = vunpack.c.l.b16 %v1271
      %v1336 = vunpack.c.l.b16 %v1272
      %v1337 = vunpack.c.l.b16 %v1273
      %v1338 = vunpack.c.l.b16 %v1274
      %v1339 = vunpack.c.l.b16 %v1275
      %v1340 = vpack.c.b16 %v1333, %v1332
      %v1341 = vpack.c.b16 %v1335, %v1334
      %v1342 = vpack.c.b16 %v1337, %v1336
      %v1343 = vpack.c.b16 %v1339, %v1338
      %1344 = vrot.lane.b32.xlu0 %v1340, 16
      %v1345 = vpop.permute.xlu0 %1344
      %1346 = vrot.lane.b32.xlu0 %v1341, 16
      %v1347 = vpop.permute.xlu0 %1346
      %1348 = vrot.lane.b32.xlu0 %v1342, 16
      %v1349 = vpop.permute.xlu0 %1348
      %1350 = vrot.lane.b32.xlu0 %v1343, 16
      %v1351 = vpop.permute.xlu0 %1350
      %v1354 = vsel %vm286, %v1292, %v1317
      %v1357 = vsel %vm286, %v1293, %v1319
      %v1360 = vsel %vm286, %v1294, %v1321
      %v1363 = vsel %vm286, %v1295, %v1323
      %vm1364 = vcmask 130048
      %v1366 = vsel %vm1364, %v1354, %v1345
      %v1368 = vsel %vm1364, %v1357, %v1347
      %v1370 = vsel %vm1364, %v1360, %v1349
      %v1372 = vsel %vm1364, %v1363, %v1351
      %v1373 = vld [vmem:[%s2] sm:$0xf]
      %v1374 = vld [vmem:[%s2 + $0x4] sm:$0xf]
      %v1375 = vld [vmem:[%s2 + $0x8] sm:$0xf]
      %v1376 = vld [vmem:[#allocation3 + $0x40] sm:$0xff]
      %v1377 = vsel %vm557, %v1213, 0.0
      %v1378 = vsel %vm558, %v1214, 0.0
      %v1379 = vsel %vm559, %v1215, 0.0
      %v1380 = vsel %vm560, %v1216, 0.0
      %v1381 = vsel %vm561, %v1217, 0.0
      %v1382 = vsel %vm562, %v1218, 0.0
      %v1383 = vsel %vm563, %v1219, 0.0
      %v1384 = vsel %vm564, %v1376, 0.0
      %v1385 = vpack.c.bf16 %v1377, %v1377
      %v1386 = vpack.c.bf16 %v1378, %v1378
      %v1387 = vpack.c.bf16 %v1379, %v1379
      %v1388 = vpack.c.bf16 %v1380, %v1380
      %v1389 = vpack.c.bf16 %v1381, %v1381
      %v1390 = vpack.c.bf16 %v1382, %v1382
      %v1391 = vpack.c.bf16 %v1383, %v1383
      %v1392 = vpack.c.bf16 %v1384, %v1384
      %v1393 = vld [vmem:[#allocation3 + $0x41] sm:$0xff]
      %v1394 = vpack.c.bf16 %v1393, %v1393
      %v1395 = vld [vmem:[#allocation3 + $0x42] sm:$0xff]
      %v1396 = vsel %vm573, %v1253, 0.0
      %v1397 = vsel %vm574, %v1254, 0.0
      %v1398 = vsel %vm575, %v1255, 0.0
      %v1399 = vsel %vm576, %v1256, 0.0
      %v1400 = vsel %vm577, %v1257, 0.0
      %v1401 = vsel %vm578, %v1258, 0.0
      %v1402 = vsel %vm579, %v1259, 0.0
      %v1403 = vsel %vm580, %v1395, 0.0
      %v1404 = vpack.c.bf16 %v1396, %v1396
      %v1405 = vpack.c.bf16 %v1397, %v1397
      %v1406 = vpack.c.bf16 %v1398, %v1398
      %v1407 = vpack.c.bf16 %v1399, %v1399
      %v1408 = vpack.c.bf16 %v1400, %v1400
      %v1409 = vpack.c.bf16 %v1401, %v1401
      %v1410 = vpack.c.bf16 %v1402, %v1402
      %v1411 = vpack.c.bf16 %v1403, %v1403
      %v1420 = vunpack.c.l.b16 %v1385
      %v1421 = vunpack.c.l.b16 %v1386
      %v1422 = vunpack.c.l.b16 %v1387
      %v1423 = vunpack.c.l.b16 %v1388
      %v1424 = vunpack.c.l.b16 %v1389
      %v1425 = vunpack.c.l.b16 %v1390
      %v1426 = vunpack.c.l.b16 %v1391
      %v1427 = vunpack.c.l.b16 %v1392
      %v1428 = vpack.c.b16 %v1421, %v1420
      %v1429 = vpack.c.b16 %v1423, %v1422
      %v1430 = vpack.c.b16 %v1425, %v1424
      %v1431 = vpack.c.b16 %v1427, %v1426
      %v1433 = vunpack.c.l.b16 %v1394
      %v1434 = vpack.c.b16 %v1306, %v1305
      %v1435 = vpack.c.b16 %v1308, %v1307
      %v1436 = vpack.c.b16 %v1310, %v1309
      %v1437 = vpack.c.b16 %v1433, %v1311
      %1438 = vrot.lane.b32.xlu0 %v1434, 8
      %v1439 = vpop.permute.xlu0 %1438
      %1440 = vrot.lane.b32.xlu0 %v1435, 8
      %v1441 = vpop.permute.xlu0 %1440
      %1442 = vrot.lane.b32.xlu0 %v1436, 8
      %v1443 = vpop.permute.xlu0 %1442
      %1444 = vrot.lane.b32.xlu0 %v1437, 8
      %v1445 = vpop.permute.xlu0 %1444
      %v1454 = vunpack.c.l.b16 %v1404
      %v1455 = vunpack.c.l.b16 %v1405
      %v1456 = vunpack.c.l.b16 %v1406
      %v1457 = vunpack.c.l.b16 %v1407
      %v1458 = vunpack.c.l.b16 %v1408
      %v1459 = vunpack.c.l.b16 %v1409
      %v1460 = vunpack.c.l.b16 %v1410
      %v1461 = vunpack.c.l.b16 %v1411
      %v1462 = vpack.c.b16 %v1455, %v1454
      %v1463 = vpack.c.b16 %v1457, %v1456
      %v1464 = vpack.c.b16 %v1459, %v1458
      %v1465 = vpack.c.b16 %v1461, %v1460
      %1466 = vrot.lane.b32.xlu0 %v1462, 16
      %v1467 = vpop.permute.xlu0 %1466
      %1468 = vrot.lane.b32.xlu0 %v1463, 16
      %v1469 = vpop.permute.xlu0 %1468
      %1470 = vrot.lane.b32.xlu0 %v1464, 16
      %v1471 = vpop.permute.xlu0 %1470
      %1472 = vrot.lane.b32.xlu0 %v1465, 16
      %v1473 = vpop.permute.xlu0 %1472
      %v1476 = vsel %vm286, %v1428, %v1439
      %v1479 = vsel %vm286, %v1429, %v1441
      %v1482 = vsel %vm286, %v1430, %v1443
      %v1485 = vsel %vm286, %v1431, %v1445
      %v1487 = vsel %vm1364, %v1476, %v1467
      %v1489 = vsel %vm1364, %v1479, %v1469
      %v1491 = vsel %vm1364, %v1482, %v1471
      %v1493 = vsel %vm1364, %v1485, %v1473
      %s1494 = scalar_lea.vmem %s2, 12
      %v1495 = vld [vmem:[%s1494] sm:$0xf]
      %v1496 = vld [vmem:[%s1494 + $0x4] sm:$0xf]
      %v1497 = vld [vmem:[%s1494 + $0x8] sm:$0xf]
      %v1501 = vunpack.c.l.b16 %v1495
      %v1502 = vunpack.c.l.b16 %v1496
      %v1503 = vunpack.c.l.b16 %v1497
      %v1504 = vpack.c.b16 %v1502, %v1501
      %v1505 = vpack.c.b16 %v1503, %v1503
      %vm1507 = vcmask 195584
      %v1508 = vsel %vm1507, %v1487, 0
      %v1510 = vsel %vm1507, %v1489, 0
      %v1512 = vsel %vm1507, %v1491, 0
      %v1514 = vsel %vm1507, %v1493, 0
      %vm1516 = vcmask 1043456
      %v1518 = vsel %vm1516, %v1505, 0
      %1520 = vmatpush.bf16.msra.mxu0 0
      %1521 = vmatpush.bf16.msra.mxu0 0
      %1522 = vmatpush.bf16.msra.mxu0 0
      %1523 = vmatpush.bf16.msra.mxu0 0
      %1524 = vmatpush.bf16.msra.mxu0 0
      %1525 = vmatpush.bf16.msra.mxu0 0
      %1526 = vmatpush.bf16.msra.mxu0 %v1518
      %1527 = vmatpush.bf16.msra.mxu0 %v1504
      %1528 = vmatmul.bf16.gmra.mxu0 %v1508
      %v1529 = vpop.f32.mrf.mxu0
      %v1530 = vadd.f32 0.0, %v1529
      %v1531 = vpop.f32.mrf.mxu0
      %v1532 = vadd.f32 0.0, %v1531
      %1533 = vmatmul.bf16.gmra.mxu0 %v1510
      %v1534 = vpop.f32.mrf.mxu0
      %v1535 = vadd.f32 0.0, %v1534
      %v1536 = vpop.f32.mrf.mxu0
      %v1537 = vadd.f32 0.0, %v1536
      %1538 = vmatmul.bf16.gmra.mxu0 %v1512
      %v1539 = vpop.f32.mrf.mxu0
      %v1540 = vadd.f32 0.0, %v1539
      %v1541 = vpop.f32.mrf.mxu0
      %v1542 = vadd.f32 0.0, %v1541
      %1543 = vmatmul.bf16.gmra.mxu0 %v1514
      %v1544 = vpop.f32.mrf.mxu0
      %v1545 = vadd.f32 0.0, %v1544
      %v1546 = vpop.f32.mrf.mxu0
      %v1547 = vadd.f32 0.0, %v1546
      %1548 = vdwg.mxu0
      %v1552 = vunpack.c.l.b16 %v1373
      %v1553 = vunpack.c.l.b16 %v1374
      %v1554 = vunpack.c.l.b16 %v1375
      %v1555 = vpack.c.b16 %v1553, %v1552
      %v1556 = vpack.c.b16 %v1554, %v1554
      %v1558 = vsel %vm1507, %v1366, 0
      %v1560 = vsel %vm1507, %v1368, 0
      %v1562 = vsel %vm1507, %v1370, 0
      %v1564 = vsel %vm1507, %v1372, 0
      %v1567 = vsel %vm1516, %v1556, 0
      %1569 = vmatpush.bf16.msra.mxu0 0
      %1570 = vmatpush.bf16.msra.mxu0 0
      %1571 = vmatpush.bf16.msra.mxu0 0
      %1572 = vmatpush.bf16.msra.mxu0 0
      %1573 = vmatpush.bf16.msra.mxu0 0
      %1574 = vmatpush.bf16.msra.mxu0 0
      %1575 = vmatpush.bf16.msra.mxu0 %v1567
      %1576 = vmatpush.bf16.msra.mxu0 %v1555
      %1577 = vmatmul.bf16.gmra.mxu0 %v1558
      %v1578 = vpop.f32.mrf.mxu0
      %v1579 = vadd.f32 %v1530, %v1578
      %v1580 = vpop.f32.mrf.mxu0
      %v1581 = vadd.f32 %v1532, %v1580
      %1582 = vmatmul.bf16.gmra.mxu0 %v1560
      %v1583 = vpop.f32.mrf.mxu0
      %v1584 = vadd.f32 %v1535, %v1583
      %v1585 = vpop.f32.mrf.mxu0
      %v1586 = vadd.f32 %v1537, %v1585
      %1587 = vmatmul.bf16.gmra.mxu0 %v1562
      %v1588 = vpop.f32.mrf.mxu0
      %v1589 = vadd.f32 %v1540, %v1588
      %v1590 = vpop.f32.mrf.mxu0
      %v1591 = vadd.f32 %v1542, %v1590
      %1592 = vmatmul.bf16.gmra.mxu0 %v1564
      %v1593 = vpop.f32.mrf.mxu0
      %v1594 = vadd.f32 %v1545, %v1593
      %v1595 = vpop.f32.mrf.mxu0
      %v1596 = vadd.f32 %v1547, %v1595
      %1597 = vdwg.mxu0
      %v1598 = vld [vmem:[#allocation3 + $0x10] sm:$0xff]
      %v1599 = vld [vmem:[#allocation3 + $0x18] sm:$0xff]
      %v1600 = vld [vmem:[#allocation3 + $0x20] sm:$0xff]
      %v1601 = vld [vmem:[#allocation3 + $0x28] sm:$0xff]
      %v1602 = vld [vmem:[#allocation3 + $0x30] sm:$0xff]
      %v1603 = vld [vmem:[#allocation3 + $0x38] sm:$0xff]
      %v1604 = vld [vmem:[#allocation3 + $0x40] sm:$0xff]
      %v1605 = vld [vmem:[#allocation3 + $0x48] sm:$0xff]
      %v1606 = vsel %vm557, %v1598, 0.0
      %v1607 = vsel %vm558, %v1599, 0.0
      %v1608 = vsel %vm559, %v1600, 0.0
      %v1609 = vsel %vm560, %v1601, 0.0
      %v1610 = vsel %vm561, %v1602, 0.0
      %v1611 = vsel %vm562, %v1603, 0.0
      %v1612 = vsel %vm563, %v1604, 0.0
      %v1613 = vsel %vm564, %v1605, 0.0
      %v1614 = vpack.c.bf16 %v1606, %v1606
      %v1615 = vpack.c.bf16 %v1607, %v1607
      %v1616 = vpack.c.bf16 %v1608, %v1608
      %v1617 = vpack.c.bf16 %v1609, %v1609
      %v1618 = vpack.c.bf16 %v1610, %v1610
      %v1619 = vpack.c.bf16 %v1611, %v1611
      %v1620 = vpack.c.bf16 %v1612, %v1612
      %v1621 = vpack.c.bf16 %v1613, %v1613
      %v1622 = vld [vmem:[#allocation3 + $0x11] sm:$0xff]
      %v1623 = vld [vmem:[#allocation3 + $0x19] sm:$0xff]
      %v1624 = vld [vmem:[#allocation3 + $0x21] sm:$0xff]
      %v1625 = vld [vmem:[#allocation3 + $0x29] sm:$0xff]
      %v1626 = vld [vmem:[#allocation3 + $0x31] sm:$0xff]
      %v1627 = vld [vmem:[#allocation3 + $0x39] sm:$0xff]
      %v1628 = vld [vmem:[#allocation3 + $0x41] sm:$0xff]
      %v1629 = vld [vmem:[#allocation3 + $0x49] sm:$0xff]
      %v1630 = vpack.c.bf16 %v1622, %v1622
      %v1631 = vpack.c.bf16 %v1623, %v1623
      %v1632 = vpack.c.bf16 %v1624, %v1624
      %v1633 = vpack.c.bf16 %v1625, %v1625
      %v1634 = vpack.c.bf16 %v1626, %v1626
      %v1635 = vpack.c.bf16 %v1627, %v1627
      %v1636 = vpack.c.bf16 %v1628, %v1628
      %v1637 = vpack.c.bf16 %v1629, %v1629
      %v1638 = vld [vmem:[#allocation3 + $0x12] sm:$0xff]
      %v1639 = vld [vmem:[#allocation3 + $0x1a] sm:$0xff]
      %v1640 = vld [vmem:[#allocation3 + $0x22] sm:$0xff]
      %v1641 = vld [vmem:[#allocation3 + $0x2a] sm:$0xff]
      %v1642 = vld [vmem:[#allocation3 + $0x32] sm:$0xff]
      %v1643 = vld [vmem:[#allocation3 + $0x3a] sm:$0xff]
      %v1644 = vld [vmem:[#allocation3 + $0x42] sm:$0xff]
      %v1645 = vld [vmem:[#allocation3 + $0x4a] sm:$0xff]
      %v1646 = vsel %vm573, %v1638, 0.0
      %v1647 = vsel %vm574, %v1639, 0.0
      %v1648 = vsel %vm575, %v1640, 0.0
      %v1649 = vsel %vm576, %v1641, 0.0
      %v1650 = vsel %vm577, %v1642, 0.0
      %v1651 = vsel %vm578, %v1643, 0.0
      %v1652 = vsel %vm579, %v1644, 0.0
      %v1653 = vsel %vm580, %v1645, 0.0
      %v1654 = vpack.c.bf16 %v1646, %v1646
      %v1655 = vpack.c.bf16 %v1647, %v1647
      %v1656 = vpack.c.bf16 %v1648, %v1648
      %v1657 = vpack.c.bf16 %v1649, %v1649
      %v1658 = vpack.c.bf16 %v1650, %v1650
      %v1659 = vpack.c.bf16 %v1651, %v1651
      %v1660 = vpack.c.bf16 %v1652, %v1652
      %v1661 = vpack.c.bf16 %v1653, %v1653
      %v1670 = vunpack.c.l.b16 %v1614
      %v1671 = vunpack.c.l.b16 %v1615
      %v1672 = vunpack.c.l.b16 %v1616
      %v1673 = vunpack.c.l.b16 %v1617
      %v1674 = vunpack.c.l.b16 %v1618
      %v1675 = vunpack.c.l.b16 %v1619
      %v1676 = vunpack.c.l.b16 %v1620
      %v1677 = vunpack.c.l.b16 %v1621
      %v1678 = vpack.c.b16 %v1671, %v1670
      %v1679 = vpack.c.b16 %v1673, %v1672
      %v1680 = vpack.c.b16 %v1675, %v1674
      %v1681 = vpack.c.b16 %v1677, %v1676
      %v1690 = vunpack.c.l.b16 %v1630
      %v1691 = vunpack.c.l.b16 %v1631
      %v1692 = vunpack.c.l.b16 %v1632
      %v1693 = vunpack.c.l.b16 %v1633
      %v1694 = vunpack.c.l.b16 %v1634
      %v1695 = vunpack.c.l.b16 %v1635
      %v1696 = vunpack.c.l.b16 %v1636
      %v1697 = vunpack.c.l.b16 %v1637
      %v1698 = vpack.c.b16 %v1691, %v1690
      %v1699 = vpack.c.b16 %v1693, %v1692
      %v1700 = vpack.c.b16 %v1695, %v1694
      %v1701 = vpack.c.b16 %v1697, %v1696
      %1702 = vrot.lane.b32.xlu0 %v1698, 8
      %v1703 = vpop.permute.xlu0 %1702
      %1704 = vrot.lane.b32.xlu0 %v1699, 8
      %v1705 = vpop.permute.xlu0 %1704
      %1706 = vrot.lane.b32.xlu0 %v1700, 8
      %v1707 = vpop.permute.xlu0 %1706
      %1708 = vrot.lane.b32.xlu0 %v1701, 8
      %v1709 = vpop.permute.xlu0 %1708
      %v1718 = vunpack.c.l.b16 %v1654
      %v1719 = vunpack.c.l.b16 %v1655
      %v1720 = vunpack.c.l.b16 %v1656
      %v1721 = vunpack.c.l.b16 %v1657
      %v1722 = vunpack.c.l.b16 %v1658
      %v1723 = vunpack.c.l.b16 %v1659
      %v1724 = vunpack.c.l.b16 %v1660
      %v1725 = vunpack.c.l.b16 %v1661
      %v1726 = vpack.c.b16 %v1719, %v1718
      %v1727 = vpack.c.b16 %v1721, %v1720
      %v1728 = vpack.c.b16 %v1723, %v1722
      %v1729 = vpack.c.b16 %v1725, %v1724
      %1730 = vrot.lane.b32.xlu0 %v1726, 16
      %v1731 = vpop.permute.xlu0 %1730
      %1732 = vrot.lane.b32.xlu0 %v1727, 16
      %v1733 = vpop.permute.xlu0 %1732
      %1734 = vrot.lane.b32.xlu0 %v1728, 16
      %v1735 = vpop.permute.xlu0 %1734
      %1736 = vrot.lane.b32.xlu0 %v1729, 16
      %v1737 = vpop.permute.xlu0 %1736
      %v1740 = vsel %vm286, %v1678, %v1703
      %v1743 = vsel %vm286, %v1679, %v1705
      %v1746 = vsel %vm286, %v1680, %v1707
      %v1749 = vsel %vm286, %v1681, %v1709
      %v1751 = vsel %vm1364, %v1740, %v1731
      %v1753 = vsel %vm1364, %v1743, %v1733
      %v1755 = vsel %vm1364, %v1746, %v1735
      %v1757 = vsel %vm1364, %v1749, %v1737
      %s1758 = scalar_lea.vmem %s2, 24
      %v1759 = vld [vmem:[%s1758] sm:$0xf]
      %v1760 = vld [vmem:[%s1758 + $0x4] sm:$0xf]
      %v1761 = vld [vmem:[%s1758 + $0x8] sm:$0xf]
      %v1765 = vunpack.c.l.b16 %v1759
      %v1766 = vunpack.c.l.b16 %v1760
      %v1767 = vunpack.c.l.b16 %v1761
      %v1768 = vpack.c.b16 %v1766, %v1765
      %v1769 = vpack.c.b16 %v1767, %v1767
      %v1771 = vsel %vm1507, %v1751, 0
      %v1773 = vsel %vm1507, %v1753, 0
      %v1775 = vsel %vm1507, %v1755, 0
      %v1777 = vsel %vm1507, %v1757, 0
      %v1780 = vsel %vm1516, %v1769, 0
      %1782 = vmatpush.bf16.msra.mxu0 0
      %1783 = vmatpush.bf16.msra.mxu0 0
      %1784 = vmatpush.bf16.msra.mxu0 0
      %1785 = vmatpush.bf16.msra.mxu0 0
      %1786 = vmatpush.bf16.msra.mxu0 0
      %1787 = vmatpush.bf16.msra.mxu0 0
      %1788 = vmatpush.bf16.msra.mxu0 %v1780
      %1789 = vmatpush.bf16.msra.mxu0 %v1768
      %1790 = vmatmul.bf16.gmra.mxu0 %v1771
      %v1791 = vpop.f32.mrf.mxu0
      %v1792 = vadd.f32 0.0, %v1791
      %v1793 = vpop.f32.mrf.mxu0
      %v1794 = vadd.f32 0.0, %v1793
      %1795 = vmatmul.bf16.gmra.mxu0 %v1773
      %v1796 = vpop.f32.mrf.mxu0
      %v1797 = vadd.f32 0.0, %v1796
      %v1798 = vpop.f32.mrf.mxu0
      %v1799 = vadd.f32 0.0, %v1798
      %1800 = vmatmul.bf16.gmra.mxu0 %v1775
      %v1801 = vpop.f32.mrf.mxu0
      %v1802 = vadd.f32 0.0, %v1801
      %v1803 = vpop.f32.mrf.mxu0
      %v1804 = vadd.f32 0.0, %v1803
      %1805 = vmatmul.bf16.gmra.mxu0 %v1777
      %v1806 = vpop.f32.mrf.mxu0
      %v1807 = vadd.f32 0.0, %v1806
      %v1808 = vpop.f32.mrf.mxu0
      %v1809 = vadd.f32 0.0, %v1808
      %1810 = vdwg.mxu0
      %v1811 = vadd.f32 %v1579, %v1792
      %v1812 = vadd.f32 %v1581, %v1794
      %v1813 = vadd.f32 %v1584, %v1797
      %v1814 = vadd.f32 %v1586, %v1799
      %v1815 = vadd.f32 %v1589, %v1802
      %v1816 = vadd.f32 %v1591, %v1804
      %v1817 = vadd.f32 %v1594, %v1807
      %v1818 = vadd.f32 %v1596, %v1809
      %v1819 = vld [vmem:[%s5] sm:$0x1]
      %v1821 = vperm.slane %v1819, 0
      %v1823 = vmul.f32 %v1811, %v1821
      %v1824 = vmul.f32 %v1812, %v1821
      %v1825 = vmul.f32 %v1813, %v1821
      %v1826 = vmul.f32 %v1814, %v1821
      %v1827 = vmul.f32 %v1815, %v1821
      %v1828 = vmul.f32 %v1816, %v1821
      %v1829 = vmul.f32 %v1817, %v1821
      %v1830 = vmul.f32 %v1818, %v1821
      %v1831 = vld [vmem:[%s6] sm:$0x1]
      %v1833 = vperm.slane %v1831, 0
      %v1835 = vadd.f32 %v1823, %v1833
      %v1836 = vadd.f32 %v1824, %v1833
      %v1837 = vadd.f32 %v1825, %v1833
      %v1838 = vadd.f32 %v1826, %v1833
      %v1839 = vadd.f32 %v1827, %v1833
      %v1840 = vadd.f32 %v1828, %v1833
      %v1841 = vadd.f32 %v1829, %v1833
      %v1842 = vadd.f32 %v1830, %v1833
      %v1843 = vmax.f32 %v1835, 0.0
      %v1844 = vmax.f32 %v1836, 0.0
      %v1845 = vmax.f32 %v1837, 0.0
      %v1846 = vmax.f32 %v1838, 0.0
      %v1847 = vmax.f32 %v1839, 0.0
      %v1848 = vmax.f32 %v1840, 0.0
      %v1849 = vmax.f32 %v1841, 0.0
      %v1850 = vmax.f32 %v1842, 0.0
      %v1851 = vpack.c.bf16 %v1843, %v1843
      %v1852 = vpack.c.bf16 %v1844, %v1844
      %v1853 = vpack.c.bf16 %v1845, %v1845
      %v1854 = vpack.c.bf16 %v1846, %v1846
      %v1855 = vpack.c.bf16 %v1847, %v1847
      %v1856 = vpack.c.bf16 %v1848, %v1848
      %v1857 = vpack.c.bf16 %v1849, %v1849
      %v1858 = vpack.c.bf16 %v1850, %v1850
      %vm1859 = vcmask 60416
      %1860 = vst.msk [vmem:[%s278] sm:$0xf] %vm1859, %v1851
      %1861 = vst.msk [vmem:[%s278 + $0x4] sm:$0xf] %vm1859, %v1852
      %1862 = vst.msk [vmem:[%s278 + $0x8] sm:$0xf] %vm1859, %v1853
      %1863 = vst.msk [vmem:[%s278 + $0xc] sm:$0xf] %vm1859, %v1854
      %1864 = vst.msk [vmem:[%s278 + $0x10] sm:$0xf] %vm1859, %v1855
      %1865 = vst.msk [vmem:[%s278 + $0x14] sm:$0xf] %vm1859, %v1856
      %1866 = vst.msk [vmem:[%s278 + $0x18] sm:$0xf] %vm1859, %v1857
      %1867 = vst.msk [vmem:[%s278 + $0x1c] sm:$0xf] %vm1859, %v1858
      %p1868 = scmp.lt.s32.totalorder %s18, 1
      %s1869 = scalar_select %p1868, %s18, 1
      %s1870 = smul.addr %s1869, 8
      %s1871 = smul.addr %s1870, 4
      %s1872 = scalar_lea.vmem %s7, %s1871
      // Predicated region
      $region49: #{tpu_custom_call.1} parent=47 // pred_check
        %p1873 = pneg %p188
      $region50: #{tpu_custom_call.1} parent=47 // pred_check_branch
        %1875 = sbr.rel (%p1873) target = $region52
      $region51: #{tpu_custom_call.1} parent=47 // pred_region
        _
      $region52: #{tpu_custom_call.1} parent=47 // pred_fallthru
        _
    $region48: #{tpu_custom_call.1} parent=5 // pred_fallthru
      _
    %p1876 = scmp.le.s32.totalorder 2, %s13
    // Predicated region
    $region53: #{tpu_custom_call.1} parent=5 // pred_check
      %p1877 = pneg %p1876
    $region54: #{tpu_custom_call.1} parent=5 // pred_check_branch
      %1879 = sbr.rel (%p1877) target = $region56
    $region55: #{tpu_custom_call.1} parent=5 // pred_region
      %s1880 = ssub.s32 %s13, 2
      // Predicated region
      $region57: #{tpu_custom_call.1} parent=55 // pred_check
        %p1881 = pneg %p194
      $region58: #{tpu_custom_call.1} parent=55 // pred_check_branch
        %1883 = sbr.rel (%p1881) target = $region60
      $region59: #{tpu_custom_call.1} parent=55 // pred_region
        %p1884 = scmp.lt.s32.totalorder %s19, 1
        %s1885 = scalar_select %p1884, %s19, 1
        %s1886 = smul.addr %s1885, 8
        %s1887 = smul.addr %s1886, 4
        %s1888 = scalar_lea.vmem %s7, %s1887
      $region60: #{tpu_custom_call.1} parent=55 // pred_fallthru
        _
    $region56: #{tpu_custom_call.1} parent=5 // pred_fallthru
      _
  $region6: #{tpu_custom_call.1} parent=0 // loop_footer
    %s17 = sadd.s32 1, %s13
  $region7: #{tpu_custom_call.1} parent=0 // loop_footer_branch
    %12 = sbr.rel target = $region3
  $region8: #{tpu_custom_call.1} parent=0 // loop_exit
    _

</llo_original>
